<compile_context>
chip_gen: v7x
topology: tpu7x:2x2x1
jax: 0.10.0
libtpu: 0.0.40
codegen_flags: <defaults>
</compile_context>

<pallas_src>
import jax
import jax.numpy as jnp
import numpy as np
from jax.experimental import pallas as pl
from jax.experimental.pallas import tpu as pltpu

# -------------------- problem sizes (small, consistent with the module) --------------------
C = 8          # input_size
S = 16         # seq_len
B = 2          # batch
K_BIG = 25     # conv_one/three/five kernel size (padding 12)
K_SMALL = 3    # conv_3_ kernel size (padding 1)
BN_EPS = 1e-5
CP = 12 * C    # 96 concatenated branch channels
PM = 128       # lane-dense padded width for the middle activations (96 -> 128)


# -------------------- Pallas kernel --------------------
def conv_fb_kernel(x_ref, pwb_ref, pb_ref, a1_ref, b1_ref, a3_ref, b3_ref, out_ref):
    # x_ref: (B, S*C) f32.  All weights are pre-fused, lane-dense, tile-aligned.
    x = x_ref[...]

    # prenet: per-timestep Linear(C,C)+ReLU as one block-diagonal matmul.
    # TODO(synk): training-mode Dropout(0.5) in the prenet is not modeled (inference semantics).
    h = jnp.dot(x.astype(jnp.bfloat16), pwb_ref[...],
                preferred_element_type=jnp.float32)              # (B, S*C)
    h = jnp.maximum(h + pb_ref[...], 0.0)

    # fused conv_one/three/five: Conv1d(C,12C,k=25,p=12) + bias + ReLU as one Toeplitz matmul
    # (zero padding is encoded in A1; BN affine is folded into the next stage).
    y = jnp.dot(h.astype(jnp.bfloat16), a1_ref[...],
                preferred_element_type=jnp.float32)              # (B, S*PM)
    y = jnp.maximum(y + b1_ref[...], 0.0)

    # conv_3_: Conv1d(12C,C,k=3,p=1) with shared-BN scale folded into A3 and the
    # (edge-exact) BN shift + conv bias folded into b3, then ReLU.
    o = jnp.dot(y.astype(jnp.bfloat16), a3_ref[...],
                preferred_element_type=jnp.float32)              # (B, S*C)
    o = jnp.maximum(o + b3_ref[...], 0.0)

    out_ref[...] = o.astype(out_ref.dtype)


# -------------------- host-side parameter fusion --------------------
def _build_fused_operands(p):
    f = lambda a: np.asarray(a, dtype=np.float32)
    pw, pb = f(p["pw"]), f(p["pb"])[0]                                  # (C,C), (C,)
    w25 = np.concatenate([f(p["w1"]), f(p["w2"]), f(p["w3"])], axis=2)  # (25, C, 96)
    b12 = np.concatenate([f(p["b1"]), f(p["b2"]), f(p["b3"])], axis=1)[0]   # (96,)
    scale12 = np.tile(f(p["bn_scale"])[0], 3)                           # (96,) shared BN x3
    shift12 = np.tile(f(p["bn_shift"])[0], 3)                           # (96,)
    wc, bc = f(p["wc"]), f(p["bc"])[0]                                  # (3, 96, C), (C,)
    pad_b, pad_s = K_BIG // 2, K_SMALL // 2

    # A) prenet block-diagonal: (S*C, S*C)
    pw_blk = np.kron(np.eye(S, dtype=np.float32), pw)
    pb_full = np.tile(pb, S)                                            # (S*C,)

    # B) fused 3-branch k=25 conv as a Toeplitz matrix over the flat seq*channel axis.
    #    A1[t'*C+ci, t*PM+o] = W25[t'-t+12, ci, o]  (zero outside the window / for o>=96).
    a1 = np.zeros((S * C, S * PM), np.float32)
    b1_full = np.zeros((S * PM,), np.float32)
    for t in range(S):
        b1_full[t * PM:t * PM + CP] = b12
        for d in range(K_BIG):
            tp = t + d - pad_b
            if 0 <= tp < S:
                a1[tp * C:(tp + 1) * C, t * PM:t * PM + CP] = w25[d]

    # C) conv_3_ Toeplitz with BN folded in:
    #    A3[t'*PM+ci, t*C+co] = wc[t'-t+1, ci, co] * bn_scale[ci]
    #    b3[t*C+co]           = bc[co] + sum_{valid taps} wc[d,:,co] . bn_shift
    #    (per-position shift bias keeps the zero-padded conv edges exact).
    a3 = np.zeros((S * PM, S * C), np.float32)
    b3_full = np.zeros((S * C,), np.float32)
    for t in range(S):
        b3_full[t * C:(t + 1) * C] = bc
        for d in range(K_SMALL):
            tp = t + d - pad_s
            if 0 <= tp < S:
                a3[tp * PM:tp * PM + CP, t * C:(t + 1) * C] = wc[d] * scale12[:, None]
                b3_full[t * C:(t + 1) * C] += wc[d].T @ shift12

    return dict(
        pw_blk=jnp.asarray(pw_blk, jnp.bfloat16),        # (128, 128)
        pb=jnp.asarray(pb_full[None, :], jnp.float32),   # (1, 128)
        a1=jnp.asarray(a1, jnp.bfloat16),                # (128, 2048)
        b1=jnp.asarray(b1_full[None, :], jnp.float32),   # (1, 2048)
        a3=jnp.asarray(a3, jnp.bfloat16),                # (2048, 128)
        b3=jnp.asarray(b3_full[None, :], jnp.float32),   # (1, 128)
    )


# -------------------- wrapper --------------------
def conv_fb_highway(x_sbc, params):
    """x_sbc: (S, B, C) float32 -> (S, B, C) float32 (same as the PyTorch module)."""
    s, b, c = x_sbc.shape
    fused = _build_fused_operands(params)
    x_flat = jnp.transpose(x_sbc, (1, 0, 2)).reshape(b, s * c)          # (B, S*C) lane-dense

    operands = [x_flat, fused["pw_blk"], fused["pb"], fused["a1"],
                fused["b1"], fused["a3"], fused["b3"]]

    def full_spec(arr):
        nd = arr.ndim
        return pl.BlockSpec(arr.shape, lambda i, _nd=nd: (0,) * _nd)

    out_flat = pl.pallas_call(
        conv_fb_kernel,
        out_shape=jax.ShapeDtypeStruct((b, s * c), jnp.float32),        # lane-dense output
        grid=(1,),                                                      # whole batch, one invocation
        in_specs=[full_spec(a) for a in operands],
        out_specs=pl.BlockSpec((b, s * c), lambda i: (0, 0)),
        compiler_params=pltpu.CompilerParams(dimension_semantics=("arbitrary",)),
    )(*operands)

    out_bsc = out_flat.reshape(b, s, c)
    return jnp.transpose(out_bsc, (1, 0, 2))                            # (S, B, C)


# -------------------- deterministic parameter init --------------------
def make_params(key):
    ks = jax.random.split(key, 12)
    scale = 0.1
    pw = scale * jax.random.normal(ks[0], (C, C), jnp.float32)          # (Cin, Cout) = Linear.weight.T
    pb = scale * jax.random.normal(ks[1], (1, C), jnp.float32)
    # conv weights stored as (k, Cin, Cout)  (PyTorch layout would be (Cout, Cin, k))
    w1 = scale * jax.random.normal(ks[2], (K_BIG, C, 4 * C), jnp.float32)
    b1 = scale * jax.random.normal(ks[3], (1, 4 * C), jnp.float32)
    w2 = scale * jax.random.normal(ks[4], (K_BIG, C, 4 * C), jnp.float32)
    b2 = scale * jax.random.normal(ks[5], (1, 4 * C), jnp.float32)
    w3 = scale * jax.random.normal(ks[6], (K_BIG, C, 4 * C), jnp.float32)
    b3 = scale * jax.random.normal(ks[7], (1, 4 * C), jnp.float32)
    wc = scale * jax.random.normal(ks[8], (K_SMALL, 12 * C, C), jnp.float32)
    bc = scale * jax.random.normal(ks[9], (1, C), jnp.float32)
    # BatchNorm1d(4C) default init & running stats: gamma=1, beta=0, mean=0, var=1
    gamma = jnp.ones((4 * C,), jnp.float32)
    beta = jnp.zeros((4 * C,), jnp.float32)
    running_mean = jnp.zeros((4 * C,), jnp.float32)
    running_var = jnp.ones((4 * C,), jnp.float32)
    bn_scale = (gamma / jnp.sqrt(running_var + BN_EPS))[None, :]         # (1, 4C)
    bn_shift = (beta - running_mean * bn_scale[0])[None, :]              # (1, 4C)
    return dict(pw=pw, pb=pb, w1=w1, b1=b1, w2=w2, b2=b2, w3=w3, b3=b3,
                bn_scale=bn_scale, bn_shift=bn_shift, wc=wc, bc=bc)


# -------------------- pure-JAX reference (PyTorch NCL conv semantics, f32) --------------------
def reference(x_sbc, p):
    xb = jnp.transpose(x_sbc, (1, 0, 2))                  # (B, S, C)
    h = jax.nn.relu(xb @ p["pw"] + p["pb"])               # prenet
    hc = jnp.transpose(h, (0, 2, 1))                      # (B, C, S)

    def conv1d(inp, w_kic, bias, pad):
        w_oik = jnp.transpose(w_kic, (2, 1, 0))           # (O, I, K) as in PyTorch
        out = jax.lax.conv_general_dilated(
            inp, w_oik, window_strides=(1,), padding=[(pad, pad)],
            dimension_numbers=("NCH", "OIH", "NCH"))
        return out + bias[0][None, :, None]

    def branch(w, b):
        y = jax.nn.relu(conv1d(hc, w, b, K_BIG // 2))
        return y * p["bn_scale"][0][None, :, None] + p["bn_shift"][0][None, :, None]

    y1 = branch(p["w1"], p["b1"])
    y2 = branch(p["w2"], p["b2"])
    y3 = branch(p["w3"], p["b3"])
    cat = jnp.concatenate([y1, y2, y3], axis=1)           # (B, 12C, S)
    out = jax.nn.relu(conv1d(cat, p["wc"], p["bc"], K_SMALL // 2))  # (B, C, S)
    out = jnp.transpose(out, (0, 2, 1))                   # (B, S, C)
    return jnp.transpose(out, (1, 0, 2))                  # (S, B, C)


if __name__ == "__main__":
    key = jax.random.PRNGKey(0)
    kx, kp = jax.random.split(key)
    x = jax.random.normal(kx, (S, B, C), jnp.float32)     # module input: (seq, batch, input_size)
    params = make_params(kp)

    out = jax.block_until_ready(conv_fb_highway(x, params))
    ref = jax.block_until_ready(reference(x, params))

    # bf16 MXU operands (f32 accumulation) -> loosened tolerance vs. the f32 reference.
    np.testing.assert_allclose(np.asarray(out), np.asarray(ref), rtol=2e-2, atol=2e-2)
    assert out.shape == (S, B, C)
    print("KERNEL_OK")
</pallas_src>

<mosaic_0001>
module attributes {stable_mosaic.version = 11 : i64} {
  func.func @conv_fb_kernel(%arg0: i32, %arg1: memref<2x128xf32, #tpu.memory_space<vmem>>, %arg2: memref<128x128xbf16, #tpu.memory_space<vmem>>, %arg3: memref<1x128xf32, #tpu.memory_space<vmem>>, %arg4: memref<128x2048xbf16, #tpu.memory_space<vmem>>, %arg5: memref<1x2048xf32, #tpu.memory_space<vmem>>, %arg6: memref<2048x128xbf16, #tpu.memory_space<vmem>>, %arg7: memref<1x128xf32, #tpu.memory_space<vmem>>, %arg8: memref<2x128xf32, #tpu.memory_space<vmem>>) attributes {dimension_semantics = [#tpu.dimension_semantics<arbitrary>], iteration_bounds = array<i64: 1>, scalar_prefetch = 0 : i64, scratch_operands = 0 : i64, tpu.core_type = #tpu.core_type<tc>, window_params = [{pipeline_mode = #tpu.pipeline_mode<synchronous>, transform_indices = @transform_0, window_bounds = array<i64: 2, 128>}, {pipeline_mode = #tpu.pipeline_mode<synchronous>, transform_indices = @transform_1, window_bounds = array<i64: 128, 128>}, {pipeline_mode = #tpu.pipeline_mode<synchronous>, transform_indices = @transform_2, window_bounds = array<i64: 1, 128>}, {pipeline_mode = #tpu.pipeline_mode<synchronous>, transform_indices = @transform_3, window_bounds = array<i64: 128, 2048>}, {pipeline_mode = #tpu.pipeline_mode<synchronous>, transform_indices = @transform_4, window_bounds = array<i64: 1, 2048>}, {pipeline_mode = #tpu.pipeline_mode<synchronous>, transform_indices = @transform_5, window_bounds = array<i64: 2048, 128>}, {pipeline_mode = #tpu.pipeline_mode<synchronous>, transform_indices = @transform_6, window_bounds = array<i64: 1, 128>}, {pipeline_mode = #tpu.pipeline_mode<synchronous>, transform_indices = @transform_7, window_bounds = array<i64: 2, 128>}]} {
    %c0 = arith.constant 0 : index
    %c0_0 = arith.constant 0 : index
    %0 = vector.load %arg1[%c0, %c0_0] : memref<2x128xf32, #tpu.memory_space<vmem>>, vector<2x128xf32>
    %1 = arith.truncf %0 : vector<2x128xf32> to vector<2x128xbf16>
    %c0_1 = arith.constant 0 : index
    %c0_2 = arith.constant 0 : index
    %2 = vector.load %arg2[%c0_1, %c0_2] : memref<128x128xbf16, #tpu.memory_space<vmem>>, vector<128x128xbf16>
    %cst = arith.constant dense<0.000000e+00> : vector<2x128xf32>
    %3 = tpu.matmul %1, %2, %cst {dimension_numbers = #tpu.dot_dimension_numbers<[1], [0], [0], [1], [0, 0, 1, 1], [], []>} : vector<2x128xbf16>, vector<128x128xbf16>, vector<2x128xf32> -> vector<2x128xf32>
    %c0_3 = arith.constant 0 : index
    %c0_4 = arith.constant 0 : index
    %4 = vector.load %arg3[%c0_3, %c0_4] : memref<1x128xf32, #tpu.memory_space<vmem>>, vector<1x128xf32>
    %5 = vector.broadcast %4 : vector<1x128xf32> to vector<2x128xf32>
    %6 = arith.addf %3, %5 : vector<2x128xf32>
    %cst_5 = arith.constant 0.000000e+00 : f32
    %7 = vector.broadcast %cst_5 : f32 to vector<2x128xf32>
    %8 = arith.maximumf %6, %7 : vector<2x128xf32>
    %9 = arith.truncf %8 : vector<2x128xf32> to vector<2x128xbf16>
    %c0_6 = arith.constant 0 : index
    %c0_7 = arith.constant 0 : index
    %10 = vector.load %arg4[%c0_6, %c0_7] : memref<128x2048xbf16, #tpu.memory_space<vmem>>, vector<128x2048xbf16>
    %cst_8 = arith.constant dense<0.000000e+00> : vector<2x2048xf32>
    %11 = tpu.matmul %9, %10, %cst_8 {dimension_numbers = #tpu.dot_dimension_numbers<[1], [0], [0], [1], [0, 0, 1, 1], [], []>} : vector<2x128xbf16>, vector<128x2048xbf16>, vector<2x2048xf32> -> vector<2x2048xf32>
    %c0_9 = arith.constant 0 : index
    %c0_10 = arith.constant 0 : index
    %12 = vector.load %arg5[%c0_9, %c0_10] : memref<1x2048xf32, #tpu.memory_space<vmem>>, vector<1x2048xf32>
    %13 = vector.broadcast %12 : vector<1x2048xf32> to vector<2x2048xf32>
    %14 = arith.addf %11, %13 : vector<2x2048xf32>
    %cst_11 = arith.constant 0.000000e+00 : f32
    %15 = vector.broadcast %cst_11 : f32 to vector<2x2048xf32>
    %16 = arith.maximumf %14, %15 : vector<2x2048xf32>
    %17 = arith.truncf %16 : vector<2x2048xf32> to vector<2x2048xbf16>
    %c0_12 = arith.constant 0 : index
    %c0_13 = arith.constant 0 : index
    %18 = vector.load %arg6[%c0_12, %c0_13] : memref<2048x128xbf16, #tpu.memory_space<vmem>>, vector<2048x128xbf16>
    %cst_14 = arith.constant dense<0.000000e+00> : vector<2x128xf32>
    %19 = tpu.matmul %17, %18, %cst_14 {dimension_numbers = #tpu.dot_dimension_numbers<[1], [0], [0], [1], [0, 0, 1, 1], [], []>} : vector<2x2048xbf16>, vector<2048x128xbf16>, vector<2x128xf32> -> vector<2x128xf32>
    %c0_15 = arith.constant 0 : index
    %c0_16 = arith.constant 0 : index
    %20 = vector.load %arg7[%c0_15, %c0_16] : memref<1x128xf32, #tpu.memory_space<vmem>>, vector<1x128xf32>
    %21 = vector.broadcast %20 : vector<1x128xf32> to vector<2x128xf32>
    %22 = arith.addf %19, %21 : vector<2x128xf32>
    %cst_17 = arith.constant 0.000000e+00 : f32
    %23 = vector.broadcast %cst_17 : f32 to vector<2x128xf32>
    %24 = arith.maximumf %22, %23 : vector<2x128xf32>
    %c0_18 = arith.constant 0 : index
    %c0_19 = arith.constant 0 : index
    %25 = vector.load %arg8[%c0_18, %c0_19] : memref<2x128xf32, #tpu.memory_space<vmem>>, vector<2x128xf32>
    tpu.vector_store %arg8[%c0_18, %c0_19], %24 {strides = array<i32>} : memref<2x128xf32, #tpu.memory_space<vmem>>, vector<2x128xf32>,
    return
  }
  func.func @transform_0(%arg0: i32) -> (i32, i32) {
    %c0_i32 = arith.constant 0 : i32
    %c0_i32_0 = arith.constant 0 : i32
    %c0_i32_1 = arith.constant 0 : i32
    return %c0_i32, %c0_i32_0 : i32, i32
  }
  func.func @transform_1(%arg0: i32) -> (i32, i32) {
    %c0_i32 = arith.constant 0 : i32
    %c0_i32_0 = arith.constant 0 : i32
    %c0_i32_1 = arith.constant 0 : i32
    return %c0_i32, %c0_i32_0 : i32, i32
  }
  func.func @transform_2(%arg0: i32) -> (i32, i32) {
    %c0_i32 = arith.constant 0 : i32
    %c0_i32_0 = arith.constant 0 : i32
    %c0_i32_1 = arith.constant 0 : i32
    return %c0_i32, %c0_i32_0 : i32, i32
  }
  func.func @transform_3(%arg0: i32) -> (i32, i32) {
    %c0_i32 = arith.constant 0 : i32
    %c0_i32_0 = arith.constant 0 : i32
    %c0_i32_1 = arith.constant 0 : i32
    return %c0_i32, %c0_i32_0 : i32, i32
  }
  func.func @transform_4(%arg0: i32) -> (i32, i32) {
    %c0_i32 = arith.constant 0 : i32
    %c0_i32_0 = arith.constant 0 : i32
    %c0_i32_1 = arith.constant 0 : i32
    return %c0_i32, %c0_i32_0 : i32, i32
  }
  func.func @transform_5(%arg0: i32) -> (i32, i32) {
    %c0_i32 = arith.constant 0 : i32
    %c0_i32_0 = arith.constant 0 : i32
    %c0_i32_1 = arith.constant 0 : i32
    return %c0_i32, %c0_i32_0 : i32, i32
  }
  func.func @transform_6(%arg0: i32) -> (i32, i32) {
    %c0_i32 = arith.constant 0 : i32
    %c0_i32_0 = arith.constant 0 : i32
    %c0_i32_1 = arith.constant 0 : i32
    return %c0_i32, %c0_i32_0 : i32, i32
  }
  func.func @transform_7(%arg0: i32) -> (i32, i32) {
    %c0_i32 = arith.constant 0 : i32
    %c0_i32_0 = arith.constant 0 : i32
    %c0_i32_1 = arith.constant 0 : i32
    return %c0_i32, %c0_i32_0 : i32, i32
  }
}

</mosaic_0001>

<llo_original>
// kernel: tpu_custom_call.1
$region0: #{tpu_custom_call.1}
  #allocation0 [shape = 'u32[]', space=smem, size = 0x4, offset = 0x4, fixed_abs, tag = 'smem constant byte address 0x4 - core index']
  #allocation1 [shape = 'u32[144,128]{1,0:T(1,128)}', space=vmem, size = 0x12000, scoped, tag = 'internal scratch']
  %s0 = inlined_call_operand.hbm [shape: f32[2,128], index: 0, kind: input, shape index: {}]
  %s1 = inlined_call_operand.hbm [shape: bf16[128,128], index: 1, kind: input, shape index: {}]
  %s2 = inlined_call_operand.vmem [shape: f32[1,128], index: 2, kind: input, shape index: {}]
  %s3 = inlined_call_operand.hbm [shape: bf16[128,2048], index: 3, kind: input, shape index: {}]
  %s4 = inlined_call_operand.hbm [shape: f32[1,2048], index: 4, kind: input, shape index: {}]
  %s5 = inlined_call_operand.hbm [shape: bf16[2048,128], index: 5, kind: input, shape index: {}]
  %s6 = inlined_call_operand.vmem [shape: f32[1,128], index: 6, kind: input, shape index: {}]
  %s7 = inlined_call_operand.hbm [shape: f32[2,128], index: 7, kind: output, shape index: {}]
  %s8 = sld [smem:[#allocation0]]
  $region58: #{tpu_custom_call.1} parent=0
    _
  %s10 = ssub.s32 1, %s8
  %s11 = scalar_select 0, %s10, %s8
  $region1: #{tpu_custom_call.1} parent=0
    #allocation2 [shape = 'u8[1024]{0}', space=vmem, size = 0x400, scoped, tag = 'input window, operand 0, single buffered']
    #allocation3 [shape = 's32[1]{0}', space=sflag, size = 0x4, scoped, tag = 'scoped memory for tpu_custom_call.1']
    #allocation4 [shape = 's32[1]{0}', space=sflag, size = 0x4, scoped, tag = 'scoped memory for tpu_custom_call.1']
    #allocation5 [shape = 'u8[32768]{0}', space=vmem, size = 0x8000, scoped, tag = 'input window, operand 1, single buffered']
    #allocation6 [shape = 's32[1]{0}', space=sflag, size = 0x4, scoped, tag = 'scoped memory for tpu_custom_call.1']
    #allocation7 [shape = 'u8[524288]{0}', space=vmem, size = 0x80000, scoped, tag = 'input window, operand 3, single buffered']
    #allocation8 [shape = 'u8[8192]{0}', space=vmem, size = 0x2000, scoped, tag = 'input window, operand 4, single buffered']
    #allocation9 [shape = 's32[1]{0}', space=sflag, size = 0x4, scoped, tag = 'scoped memory for tpu_custom_call.1']
    #allocation10 [shape = 'u8[524288]{0}', space=vmem, size = 0x80000, scoped, tag = 'input window, operand 5, single buffered']
    #allocation11 [shape = 'u8[1024]{0}', space=vmem, size = 0x400, scoped, tag = 'output window, operand 0, single buffered']
    %12 = vsyncpa [#allocation3], 0
    %13 = vsyncpa [#allocation6], 0
    %14 = vsyncpa [#allocation9], 0
    %15 = vsyncpa [#allocation4], 0
    // Predicated region
    $region2: #{tpu_custom_call.1} parent=1 // pred_check
      _
    $region3: #{tpu_custom_call.1} parent=1 // pred_check_branch
      %17 = sbr.rel (0) target = $region5
    $region4: #{tpu_custom_call.1} parent=1 // pred_region
      %s19 = ssub.s32 32, 32
      %20 = vsyncadd [#allocation3], %s19
      %s22 = sshll.u32 [#allocation2], 4
      %s23 = int_to_ptr.vmem [resolvable:$true] %s22
      %25 = dma.hbm_to_vmem [thread:$0]  %s0, 32, %s23, [#allocation3]
    $region5: #{tpu_custom_call.1} parent=1 // pred_fallthru
      _
    // Predicated region
    $region6: #{tpu_custom_call.1} parent=1 // pred_check
      _
    $region7: #{tpu_custom_call.1} parent=1 // pred_check_branch
      %27 = sbr.rel (0) target = $region9
    $region8: #{tpu_custom_call.1} parent=1 // pred_region
      %s29 = ssub.s32 1024, 1024
      %30 = vsyncadd [#allocation6], %s29
      %s31 = sshll.u32 [#allocation5], 4
      %s32 = int_to_ptr.vmem [resolvable:$true] %s31
      %37 = dma.hbm_to_vmem [thread:$0]  %s1, 1024, %s32, [#allocation6], 64, 64, 4
    $region9: #{tpu_custom_call.1} parent=1 // pred_fallthru
      _
    // Predicated region
    $region10: #{tpu_custom_call.1} parent=1 // pred_check
      _
    $region11: #{tpu_custom_call.1} parent=1 // pred_check_branch
      %39 = sbr.rel (0) target = $region13
    $region12: #{tpu_custom_call.1} parent=1 // pred_region
      _
    $region13: #{tpu_custom_call.1} parent=1 // pred_fallthru
      _
    // Predicated region
    $region14: #{tpu_custom_call.1} parent=1 // pred_check
      _
    $region15: #{tpu_custom_call.1} parent=1 // pred_check_branch
      %41 = sbr.rel (0) target = $region17
    $region16: #{tpu_custom_call.1} parent=1 // pred_region
      %s43 = ssub.s32 16384, 16384
      %44 = vsyncadd [#allocation6], %s43
      %s45 = sshll.u32 [#allocation7], 4
      %s46 = int_to_ptr.vmem [resolvable:$true] %s45
      %51 = dma.hbm_to_vmem [thread:$0]  %s3, 16384, %s46, [#allocation6], 1024, 1024, 64
    $region17: #{tpu_custom_call.1} parent=1 // pred_fallthru
      _
    // Predicated region
    $region18: #{tpu_custom_call.1} parent=1 // pred_check
      _
    $region19: #{tpu_custom_call.1} parent=1 // pred_check_branch
      %53 = sbr.rel (0) target = $region21
    $region20: #{tpu_custom_call.1} parent=1 // pred_region
      %s55 = ssub.s32 256, 256
      %56 = vsyncadd [#allocation9], %s55
      %s58 = sshll.u32 [#allocation8], 4
      %s59 = int_to_ptr.vmem [resolvable:$true] %s58
      %61 = dma.hbm_to_vmem [thread:$0]  %s4, 256, %s59, [#allocation9]
    $region21: #{tpu_custom_call.1} parent=1 // pred_fallthru
      _
    // Predicated region
    $region22: #{tpu_custom_call.1} parent=1 // pred_check
      _
    $region23: #{tpu_custom_call.1} parent=1 // pred_check_branch
      %63 = sbr.rel (0) target = $region25
    $region24: #{tpu_custom_call.1} parent=1 // pred_region
      %s65 = ssub.s32 16384, 16384
      %66 = vsyncadd [#allocation9], %s65
      %s67 = sshll.u32 [#allocation10], 4
      %s68 = int_to_ptr.vmem [resolvable:$true] %s67
      %73 = dma.hbm_to_vmem [thread:$0]  %s5, 16384, %s68, [#allocation9], 64, 64, 4
    $region25: #{tpu_custom_call.1} parent=1 // pred_fallthru
      _
    // Predicated region
    $region26: #{tpu_custom_call.1} parent=1 // pred_check
      _
    $region27: #{tpu_custom_call.1} parent=1 // pred_check_branch
      %75 = sbr.rel (0) target = $region29
    $region28: #{tpu_custom_call.1} parent=1 // pred_region
      _
    $region29: #{tpu_custom_call.1} parent=1 // pred_fallthru
      _
    // Predicated region
    $region30: #{tpu_custom_call.1} parent=1 // pred_check
      _
    $region31: #{tpu_custom_call.1} parent=1 // pred_check_branch
      %77 = sbr.rel (0) target = $region33
    $region32: #{tpu_custom_call.1} parent=1 // pred_region
      %78 = dma.done [#allocation3], 32
    $region33: #{tpu_custom_call.1} parent=1 // pred_fallthru
      _
    // Predicated region
    $region34: #{tpu_custom_call.1} parent=1 // pred_check
      _
    $region35: #{tpu_custom_call.1} parent=1 // pred_check_branch
      %80 = sbr.rel (0) target = $region37
    $region36: #{tpu_custom_call.1} parent=1 // pred_region
      %81 = dma.done [#allocation6], 1024
    $region37: #{tpu_custom_call.1} parent=1 // pred_fallthru
      _
    // Predicated region
    $region38: #{tpu_custom_call.1} parent=1 // pred_check
      _
    $region39: #{tpu_custom_call.1} parent=1 // pred_check_branch
      %83 = sbr.rel (0) target = $region41
    $region40: #{tpu_custom_call.1} parent=1 // pred_region
      %84 = dma.done [#allocation6], 16384
    $region41: #{tpu_custom_call.1} parent=1 // pred_fallthru
      _
    // Predicated region
    $region42: #{tpu_custom_call.1} parent=1 // pred_check
      _
    $region43: #{tpu_custom_call.1} parent=1 // pred_check_branch
      %86 = sbr.rel (0) target = $region45
    $region44: #{tpu_custom_call.1} parent=1 // pred_region
      %87 = dma.done [#allocation9], 256
    $region45: #{tpu_custom_call.1} parent=1 // pred_fallthru
      _
    // Predicated region
    $region46: #{tpu_custom_call.1} parent=1 // pred_check
      _
    $region47: #{tpu_custom_call.1} parent=1 // pred_check_branch
      %89 = sbr.rel (0) target = $region49
    $region48: #{tpu_custom_call.1} parent=1 // pred_region
      %90 = dma.done [#allocation9], 16384
    $region49: #{tpu_custom_call.1} parent=1 // pred_fallthru
      _
    %v92 = vld [vmem:[#allocation2] sm:$0x3]
    %v93 = vpack.c.bf16 %v92, %v92
    %v94 = vld [vmem:[#allocation5] sm:$0xf]
    %v95 = vld [vmem:[#allocation5 + $0x4] sm:$0xf]
    %v96 = vld [vmem:[#allocation5 + $0x8] sm:$0xf]
    %v97 = vld [vmem:[#allocation5 + $0xc] sm:$0xf]
    %v98 = vld [vmem:[#allocation5 + $0x10] sm:$0xf]
    %v99 = vld [vmem:[#allocation5 + $0x14] sm:$0xf]
    %v100 = vld [vmem:[#allocation5 + $0x18] sm:$0xf]
    %v101 = vld [vmem:[#allocation5 + $0x1c] sm:$0xf]
    %v102 = vld [vmem:[#allocation5 + $0x20] sm:$0xf]
    %v103 = vld [vmem:[#allocation5 + $0x24] sm:$0xf]
    %v104 = vld [vmem:[#allocation5 + $0x28] sm:$0xf]
    %v105 = vld [vmem:[#allocation5 + $0x2c] sm:$0xf]
    %v106 = vld [vmem:[#allocation5 + $0x30] sm:$0xf]
    %v107 = vld [vmem:[#allocation5 + $0x34] sm:$0xf]
    %v108 = vld [vmem:[#allocation5 + $0x38] sm:$0xf]
    %v109 = vld [vmem:[#allocation5 + $0x3c] sm:$0xf]
    %v110 = vld [vmem:[%s2] sm:$0x1]
    %v112 = vlaneseq
    %v113 = vshrl.u32 %v112, 7
    %v114 = vsub.s32 0, %v113
    %v115 = vrot.slane %v110, %v114
    %v133 = vunpack.c.l.b16 %v94
    %v134 = vunpack.c.l.b16 %v95
    %v135 = vunpack.c.l.b16 %v96
    %v136 = vunpack.c.l.b16 %v97
    %v137 = vunpack.c.l.b16 %v98
    %v138 = vunpack.c.l.b16 %v99
    %v139 = vunpack.c.l.b16 %v100
    %v140 = vunpack.c.l.b16 %v101
    %v141 = vunpack.c.l.b16 %v102
    %v142 = vunpack.c.l.b16 %v103
    %v143 = vunpack.c.l.b16 %v104
    %v144 = vunpack.c.l.b16 %v105
    %v145 = vunpack.c.l.b16 %v106
    %v146 = vunpack.c.l.b16 %v107
    %v147 = vunpack.c.l.b16 %v108
    %v148 = vunpack.c.l.b16 %v109
    %v149 = vpack.c.b16 %v134, %v133
    %v150 = vpack.c.b16 %v136, %v135
    %v151 = vpack.c.b16 %v138, %v137
    %v152 = vpack.c.b16 %v140, %v139
    %v153 = vpack.c.b16 %v142, %v141
    %v154 = vpack.c.b16 %v144, %v143
    %v155 = vpack.c.b16 %v146, %v145
    %v156 = vpack.c.b16 %v148, %v147
    %165 = vmatprep.subr.bf16.mxu0 0
    %166 = vmatpush1.bf16.msra.mxu0 %v149
    %167 = vmatprep.subr.bf16.mxu0 0
    %168 = vmatpush1.bf16.msra.mxu0 %v150
    %169 = vmatprep.subr.bf16.mxu0 0
    %170 = vmatpush1.bf16.msra.mxu0 %v151
    %171 = vmatprep.subr.bf16.mxu0 0
    %172 = vmatpush1.bf16.msra.mxu0 %v152
    %173 = vmatprep.subr.bf16.mxu0 0
    %174 = vmatpush1.bf16.msra.mxu0 %v153
    %175 = vmatprep.subr.bf16.mxu0 0
    %176 = vmatpush1.bf16.msra.mxu0 %v154
    %177 = vmatprep.subr.bf16.mxu0 0
    %178 = vmatpush1.bf16.msra.mxu0 %v155
    %179 = vmatprep.subr.bf16.mxu0 0
    %180 = vmatpush1.bf16.msra.mxu0 %v156
    %181 = vmatprep.subr.bf16.mxu0 0
    %182 = vmatpush1.bf16.msra.mxu0 0
    %183 = vmatprep.subr.bf16.mxu0 0
    %184 = vmatpush1.bf16.msra.mxu0 0
    %185 = vmatprep.subr.bf16.mxu0 0
    %186 = vmatpush1.bf16.msra.mxu0 0
    %187 = vmatprep.subr.bf16.mxu0 0
    %188 = vmatpush1.bf16.msra.mxu0 0
    %189 = vmatprep.subr.bf16.mxu0 0
    %190 = vmatpush1.bf16.msra.mxu0 0
    %191 = vmatprep.subr.bf16.mxu0 0
    %192 = vmatpush1.bf16.msra.mxu0 0
    %193 = vmatprep.subr.bf16.mxu0 0
    %194 = vmatpush1.bf16.msra.mxu0 0
    %195 = vmatprep.subr.bf16.mxu0 0
    %196 = vmatpush1.bf16.msra.mxu0 0
    %197 = vmatprep.mubr.bf16.mxu0 0
    %198 = vmatmul.mubr.bf16.gmra.mrb[0].mxu0 %v93
    %v199 = vpop.f32.mrb[0].mxu0
    %v200 = vadd.f32 %v115, %v199
    %v201 = vpop.f32.mrb[0].mxu0
    %v202 = vpop.f32.mrb[0].mxu0
    %v203 = vpop.f32.mrb[0].mxu0
    %204 = vdwg.mxu0
    %v205 = vmax.f32 %v200, 0.0
    %v206 = vpack.c.bf16 %v205, %v205
    %v207 = vld [vmem:[#allocation7] sm:$0xff]
    %v208 = vld [vmem:[#allocation7 + $0x8] sm:$0xff]
    %v209 = vld [vmem:[#allocation7 + $0x10] sm:$0xff]
    %v210 = vld [vmem:[#allocation7 + $0x18] sm:$0xff]
    %v211 = vld [vmem:[#allocation7 + $0x20] sm:$0xff]
    %v212 = vld [vmem:[#allocation7 + $0x28] sm:$0xff]
    %v213 = vld [vmem:[#allocation7 + $0x30] sm:$0xff]
    %v214 = vld [vmem:[#allocation7 + $0x38] sm:$0xff]
    %v215 = vld [vmem:[#allocation7 + $0x40] sm:$0xff]
    %v216 = vld [vmem:[#allocation7 + $0x48] sm:$0xff]
    %v217 = vld [vmem:[#allocation7 + $0x50] sm:$0xff]
    %v218 = vld [vmem:[#allocation7 + $0x58] sm:$0xff]
    %v219 = vld [vmem:[#allocation7 + $0x60] sm:$0xff]
    %v220 = vld [vmem:[#allocation7 + $0x68] sm:$0xff]
    %v221 = vld [vmem:[#allocation7 + $0x70] sm:$0xff]
    %v222 = vld [vmem:[#allocation7 + $0x78] sm:$0xff]
    %v223 = vld [vmem:[#allocation7 + $0x80] sm:$0xff]
    %v224 = vld [vmem:[#allocation7 + $0x88] sm:$0xff]
    %v225 = vld [vmem:[#allocation7 + $0x90] sm:$0xff]
    %v226 = vld [vmem:[#allocation7 + $0x98] sm:$0xff]
    %v227 = vld [vmem:[#allocation7 + $0xa0] sm:$0xff]
    %v228 = vld [vmem:[#allocation7 + $0xa8] sm:$0xff]
    %v229 = vld [vmem:[#allocation7 + $0xb0] sm:$0xff]
    %v230 = vld [vmem:[#allocation7 + $0xb8] sm:$0xff]
    %v231 = vld [vmem:[#allocation7 + $0xc0] sm:$0xff]
    %v232 = vld [vmem:[#allocation7 + $0xc8] sm:$0xff]
    %v233 = vld [vmem:[#allocation7 + $0xd0] sm:$0xff]
    %v234 = vld [vmem:[#allocation7 + $0xd8] sm:$0xff]
    %v235 = vld [vmem:[#allocation7 + $0xe0] sm:$0xff]
    %v236 = vld [vmem:[#allocation7 + $0xe8] sm:$0xff]
    %v237 = vld [vmem:[#allocation7 + $0xf0] sm:$0xff]
    %v238 = vld [vmem:[#allocation7 + $0xf8] sm:$0xff]
    %v239 = vld [vmem:[#allocation7 + $0x100] sm:$0xff]
    %v240 = vld [vmem:[#allocation7 + $0x108] sm:$0xff]
    %v241 = vld [vmem:[#allocation7 + $0x110] sm:$0xff]
    %v242 = vld [vmem:[#allocation7 + $0x118] sm:$0xff]
    %v243 = vld [vmem:[#allocation7 + $0x120] sm:$0xff]
    %v244 = vld [vmem:[#allocation7 + $0x128] sm:$0xff]
    %v245 = vld [vmem:[#allocation7 + $0x130] sm:$0xff]
    %v246 = vld [vmem:[#allocation7 + $0x138] sm:$0xff]
    %v247 = vld [vmem:[#allocation7 + $0x140] sm:$0xff]
    %v248 = vld [vmem:[#allocation7 + $0x148] sm:$0xff]
    %v249 = vld [vmem:[#allocation7 + $0x150] sm:$0xff]
    %v250 = vld [vmem:[#allocation7 + $0x158] sm:$0xff]
    %v251 = vld [vmem:[#allocation7 + $0x160] sm:$0xff]
    %v252 = vld [vmem:[#allocation7 + $0x168] sm:$0xff]
    %v253 = vld [vmem:[#allocation7 + $0x170] sm:$0xff]
    %v254 = vld [vmem:[#allocation7 + $0x178] sm:$0xff]
    %v255 = vld [vmem:[#allocation7 + $0x180] sm:$0xff]
    %v256 = vld [vmem:[#allocation7 + $0x188] sm:$0xff]
    %v257 = vld [vmem:[#allocation7 + $0x190] sm:$0xff]
    %v258 = vld [vmem:[#allocation7 + $0x198] sm:$0xff]
    %v259 = vld [vmem:[#allocation7 + $0x1a0] sm:$0xff]
    %v260 = vld [vmem:[#allocation7 + $0x1a8] sm:$0xff]
    %v261 = vld [vmem:[#allocation7 + $0x1b0] sm:$0xff]
    %v262 = vld [vmem:[#allocation7 + $0x1b8] sm:$0xff]
    %v263 = vld [vmem:[#allocation7 + $0x1c0] sm:$0xff]
    %v264 = vld [vmem:[#allocation7 + $0x1c8] sm:$0xff]
    %v265 = vld [vmem:[#allocation7 + $0x1d0] sm:$0xff]
    %v266 = vld [vmem:[#allocation7 + $0x1d8] sm:$0xff]
    %v267 = vld [vmem:[#allocation7 + $0x1e0] sm:$0xff]
    %v268 = vld [vmem:[#allocation7 + $0x1e8] sm:$0xff]
    %v269 = vld [vmem:[#allocation7 + $0x1f0] sm:$0xff]
    %v270 = vld [vmem:[#allocation7 + $0x1f8] sm:$0xff]
    %v271 = vld [vmem:[#allocation7 + $0x200] sm:$0xff]
    %v272 = vld [vmem:[#allocation7 + $0x208] sm:$0xff]
    %v273 = vld [vmem:[#allocation7 + $0x210] sm:$0xff]
    %v274 = vld [vmem:[#allocation7 + $0x218] sm:$0xff]
    %v275 = vld [vmem:[#allocation7 + $0x220] sm:$0xff]
    %v276 = vld [vmem:[#allocation7 + $0x228] sm:$0xff]
    %v277 = vld [vmem:[#allocation7 + $0x230] sm:$0xff]
    %v278 = vld [vmem:[#allocation7 + $0x238] sm:$0xff]
    %v279 = vld [vmem:[#allocation7 + $0x240] sm:$0xff]
    %v280 = vld [vmem:[#allocation7 + $0x248] sm:$0xff]
    %v281 = vld [vmem:[#allocation7 + $0x250] sm:$0xff]
    %v282 = vld [vmem:[#allocation7 + $0x258] sm:$0xff]
    %v283 = vld [vmem:[#allocation7 + $0x260] sm:$0xff]
    %v284 = vld [vmem:[#allocation7 + $0x268] sm:$0xff]
    %v285 = vld [vmem:[#allocation7 + $0x270] sm:$0xff]
    %v286 = vld [vmem:[#allocation7 + $0x278] sm:$0xff]
    %v287 = vld [vmem:[#allocation7 + $0x280] sm:$0xff]
    %v288 = vld [vmem:[#allocation7 + $0x288] sm:$0xff]
    %v289 = vld [vmem:[#allocation7 + $0x290] sm:$0xff]
    %v290 = vld [vmem:[#allocation7 + $0x298] sm:$0xff]
    %v291 = vld [vmem:[#allocation7 + $0x2a0] sm:$0xff]
    %v292 = vld [vmem:[#allocation7 + $0x2a8] sm:$0xff]
    %v293 = vld [vmem:[#allocation7 + $0x2b0] sm:$0xff]
    %v294 = vld [vmem:[#allocation7 + $0x2b8] sm:$0xff]
    %v295 = vld [vmem:[#allocation7 + $0x2c0] sm:$0xff]
    %v296 = vld [vmem:[#allocation7 + $0x2c8] sm:$0xff]
    %v297 = vld [vmem:[#allocation7 + $0x2d0] sm:$0xff]
    %v298 = vld [vmem:[#allocation7 + $0x2d8] sm:$0xff]
    %v299 = vld [vmem:[#allocation7 + $0x2e0] sm:$0xff]
    %v300 = vld [vmem:[#allocation7 + $0x2e8] sm:$0xff]
    %v301 = vld [vmem:[#allocation7 + $0x2f0] sm:$0xff]
    %v302 = vld [vmem:[#allocation7 + $0x2f8] sm:$0xff]
    %v303 = vld [vmem:[#allocation7 + $0x300] sm:$0xff]
    %v304 = vld [vmem:[#allocation7 + $0x308] sm:$0xff]
    %v305 = vld [vmem:[#allocation7 + $0x310] sm:$0xff]
    %v306 = vld [vmem:[#allocation7 + $0x318] sm:$0xff]
    %v307 = vld [vmem:[#allocation7 + $0x320] sm:$0xff]
    %v308 = vld [vmem:[#allocation7 + $0x328] sm:$0xff]
    %v309 = vld [vmem:[#allocation7 + $0x330] sm:$0xff]
    %v310 = vld [vmem:[#allocation7 + $0x338] sm:$0xff]
    %v311 = vld [vmem:[#allocation7 + $0x340] sm:$0xff]
    %v312 = vld [vmem:[#allocation7 + $0x348] sm:$0xff]
    %v313 = vld [vmem:[#allocation7 + $0x350] sm:$0xff]
    %v314 = vld [vmem:[#allocation7 + $0x358] sm:$0xff]
    %v315 = vld [vmem:[#allocation7 + $0x360] sm:$0xff]
    %v316 = vld [vmem:[#allocation7 + $0x368] sm:$0xff]
    %v317 = vld [vmem:[#allocation7 + $0x370] sm:$0xff]
    %v318 = vld [vmem:[#allocation7 + $0x378] sm:$0xff]
    %v319 = vld [vmem:[#allocation7 + $0x380] sm:$0xff]
    %v320 = vld [vmem:[#allocation7 + $0x388] sm:$0xff]
    %v321 = vld [vmem:[#allocation7 + $0x390] sm:$0xff]
    %v322 = vld [vmem:[#allocation7 + $0x398] sm:$0xff]
    %v323 = vld [vmem:[#allocation7 + $0x3a0] sm:$0xff]
    %v324 = vld [vmem:[#allocation7 + $0x3a8] sm:$0xff]
    %v325 = vld [vmem:[#allocation7 + $0x3b0] sm:$0xff]
    %v326 = vld [vmem:[#allocation7 + $0x3b8] sm:$0xff]
    %v327 = vld [vmem:[#allocation7 + $0x3c0] sm:$0xff]
    %v328 = vld [vmem:[#allocation7 + $0x3c8] sm:$0xff]
    %v329 = vld [vmem:[#allocation7 + $0x3d0] sm:$0xff]
    %v330 = vld [vmem:[#allocation7 + $0x3d8] sm:$0xff]
    %v331 = vld [vmem:[#allocation7 + $0x3e0] sm:$0xff]
    %v332 = vld [vmem:[#allocation7 + $0x3e8] sm:$0xff]
    %v333 = vld [vmem:[#allocation7 + $0x3f0] sm:$0xff]
    %v334 = vld [vmem:[#allocation7 + $0x3f8] sm:$0xff]
    %v335 = vld [vmem:[#allocation8] sm:$0xff]
    %v336 = vld [vmem:[#allocation8 + $0x8] sm:$0xff]
    %v339 = vlaneseq
    %v340 = vshrl.u32 %v339, 7
    %v341 = vsub.s32 0, %v340
    %v342 = vrot.slane %v335, %v341
    %v343 = vlaneseq
    %v344 = vshrl.u32 %v343, 7
    %v345 = vsub.s32 1, %v344
    %v346 = vrot.slane %v335, %v345
    %v347 = vlaneseq
    %v348 = vshrl.u32 %v347, 7
    %v349 = vsub.s32 2, %v348
    %v350 = vrot.slane %v335, %v349
    %v351 = vlaneseq
    %v352 = vshrl.u32 %v351, 7
    %v353 = vsub.s32 3, %v352
    %v354 = vrot.slane %v335, %v353
    %v355 = vlaneseq
    %v356 = vshrl.u32 %v355, 7
    %v357 = vsub.s32 4, %v356
    %v358 = vrot.slane %v335, %v357
    %v359 = vlaneseq
    %v360 = vshrl.u32 %v359, 7
    %v361 = vsub.s32 5, %v360
    %v362 = vrot.slane %v335, %v361
    %v363 = vlaneseq
    %v364 = vshrl.u32 %v363, 7
    %v365 = vsub.s32 6, %v364
    %v366 = vrot.slane %v335, %v365
    %v367 = vlaneseq
    %v368 = vshrl.u32 %v367, 7
    %v369 = vsub.s32 7, %v368
    %v370 = vrot.slane %v335, %v369
    %v371 = vlaneseq
    %v372 = vshrl.u32 %v371, 7
    %v373 = vsub.s32 0, %v372
    %v374 = vrot.slane %v336, %v373
    %v375 = vlaneseq
    %v376 = vshrl.u32 %v375, 7
    %v377 = vsub.s32 1, %v376
    %v378 = vrot.slane %v336, %v377
    %v379 = vlaneseq
    %v380 = vshrl.u32 %v379, 7
    %v381 = vsub.s32 2, %v380
    %v382 = vrot.slane %v336, %v381
    %v383 = vlaneseq
    %v384 = vshrl.u32 %v383, 7
    %v385 = vsub.s32 3, %v384
    %v386 = vrot.slane %v336, %v385
    %v387 = vlaneseq
    %v388 = vshrl.u32 %v387, 7
    %v389 = vsub.s32 4, %v388
    %v390 = vrot.slane %v336, %v389
    %v391 = vlaneseq
    %v392 = vshrl.u32 %v391, 7
    %v393 = vsub.s32 5, %v392
    %v394 = vrot.slane %v336, %v393
    %v395 = vlaneseq
    %v396 = vshrl.u32 %v395, 7
    %v397 = vsub.s32 6, %v396
    %v398 = vrot.slane %v336, %v397
    %v399 = vlaneseq
    %v400 = vshrl.u32 %v399, 7
    %v401 = vsub.s32 7, %v400
    %v402 = vrot.slane %v336, %v401
    %v547 = vunpack.c.l.b16 %v207
    %v548 = vunpack.c.h.b16 %v207
    %v549 = vunpack.c.l.b16 %v208
    %v550 = vunpack.c.h.b16 %v208
    %v551 = vunpack.c.l.b16 %v209
    %v552 = vunpack.c.h.b16 %v209
    %v553 = vunpack.c.l.b16 %v210
    %v554 = vunpack.c.h.b16 %v210
    %v555 = vunpack.c.l.b16 %v211
    %v556 = vunpack.c.h.b16 %v211
    %v557 = vunpack.c.l.b16 %v212
    %v558 = vunpack.c.h.b16 %v212
    %v559 = vunpack.c.l.b16 %v213
    %v560 = vunpack.c.h.b16 %v213
    %v561 = vunpack.c.l.b16 %v214
    %v562 = vunpack.c.h.b16 %v214
    %v563 = vunpack.c.l.b16 %v215
    %v564 = vunpack.c.h.b16 %v215
    %v565 = vunpack.c.l.b16 %v216
    %v566 = vunpack.c.h.b16 %v216
    %v567 = vunpack.c.l.b16 %v217
    %v568 = vunpack.c.h.b16 %v217
    %v569 = vunpack.c.l.b16 %v218
    %v570 = vunpack.c.h.b16 %v218
    %v571 = vunpack.c.l.b16 %v219
    %v572 = vunpack.c.h.b16 %v219
    %v573 = vunpack.c.l.b16 %v220
    %v574 = vunpack.c.h.b16 %v220
    %v575 = vunpack.c.l.b16 %v221
    %v576 = vunpack.c.h.b16 %v221
    %v577 = vunpack.c.l.b16 %v222
    %v578 = vunpack.c.h.b16 %v222
    %v579 = vunpack.c.l.b16 %v223
    %v580 = vunpack.c.h.b16 %v223
    %v581 = vunpack.c.l.b16 %v224
    %v582 = vunpack.c.h.b16 %v224
    %v583 = vunpack.c.l.b16 %v225
    %v584 = vunpack.c.h.b16 %v225
    %v585 = vunpack.c.l.b16 %v226
    %v586 = vunpack.c.h.b16 %v226
    %v587 = vunpack.c.l.b16 %v227
    %v588 = vunpack.c.h.b16 %v227
    %v589 = vunpack.c.l.b16 %v228
    %v590 = vunpack.c.h.b16 %v228
    %v591 = vunpack.c.l.b16 %v229
    %v592 = vunpack.c.h.b16 %v229
    %v593 = vunpack.c.l.b16 %v230
    %v594 = vunpack.c.h.b16 %v230
    %v595 = vunpack.c.l.b16 %v231
    %v596 = vunpack.c.h.b16 %v231
    %v597 = vunpack.c.l.b16 %v232
    %v598 = vunpack.c.h.b16 %v232
    %v599 = vunpack.c.l.b16 %v233
    %v600 = vunpack.c.h.b16 %v233
    %v601 = vunpack.c.l.b16 %v234
    %v602 = vunpack.c.h.b16 %v234
    %v603 = vunpack.c.l.b16 %v235
    %v604 = vunpack.c.h.b16 %v235
    %v605 = vunpack.c.l.b16 %v236
    %v606 = vunpack.c.h.b16 %v236
    %v607 = vunpack.c.l.b16 %v237
    %v608 = vunpack.c.h.b16 %v237
    %v609 = vunpack.c.l.b16 %v238
    %v610 = vunpack.c.h.b16 %v238
    %v611 = vunpack.c.l.b16 %v239
    %v612 = vunpack.c.h.b16 %v239
    %v613 = vunpack.c.l.b16 %v240
    %v614 = vunpack.c.h.b16 %v240
    %v615 = vunpack.c.l.b16 %v241
    %v616 = vunpack.c.h.b16 %v241
    %v617 = vunpack.c.l.b16 %v242
    %v618 = vunpack.c.h.b16 %v242
    %v619 = vunpack.c.l.b16 %v243
    %v620 = vunpack.c.h.b16 %v243
    %v621 = vunpack.c.l.b16 %v244
    %v622 = vunpack.c.h.b16 %v244
    %v623 = vunpack.c.l.b16 %v245
    %v624 = vunpack.c.h.b16 %v245
    %v625 = vunpack.c.l.b16 %v246
    %v626 = vunpack.c.h.b16 %v246
    %v627 = vunpack.c.l.b16 %v247
    %v628 = vunpack.c.h.b16 %v247
    %v629 = vunpack.c.l.b16 %v248
    %v630 = vunpack.c.h.b16 %v248
    %v631 = vunpack.c.l.b16 %v249
    %v632 = vunpack.c.h.b16 %v249
    %v633 = vunpack.c.l.b16 %v250
    %v634 = vunpack.c.h.b16 %v250
    %v635 = vunpack.c.l.b16 %v251
    %v636 = vunpack.c.h.b16 %v251
    %v637 = vunpack.c.l.b16 %v252
    %v638 = vunpack.c.h.b16 %v252
    %v639 = vunpack.c.l.b16 %v253
    %v640 = vunpack.c.h.b16 %v253
    %v641 = vunpack.c.l.b16 %v254
    %v642 = vunpack.c.h.b16 %v254
    %v643 = vunpack.c.l.b16 %v255
    %v644 = vunpack.c.h.b16 %v255
    %v645 = vunpack.c.l.b16 %v256
    %v646 = vunpack.c.h.b16 %v256
    %v647 = vunpack.c.l.b16 %v257
    %v648 = vunpack.c.h.b16 %v257
    %v649 = vunpack.c.l.b16 %v258
    %v650 = vunpack.c.h.b16 %v258
    %v651 = vunpack.c.l.b16 %v259
    %v652 = vunpack.c.h.b16 %v259
    %v653 = vunpack.c.l.b16 %v260
    %v654 = vunpack.c.h.b16 %v260
    %v655 = vunpack.c.l.b16 %v261
    %v656 = vunpack.c.h.b16 %v261
    %v657 = vunpack.c.l.b16 %v262
    %v658 = vunpack.c.h.b16 %v262
    %v659 = vunpack.c.l.b16 %v263
    %v660 = vunpack.c.h.b16 %v263
    %v661 = vunpack.c.l.b16 %v264
    %v662 = vunpack.c.h.b16 %v264
    %v663 = vunpack.c.l.b16 %v265
    %v664 = vunpack.c.h.b16 %v265
    %v665 = vunpack.c.l.b16 %v266
    %v666 = vunpack.c.h.b16 %v266
    %v667 = vunpack.c.l.b16 %v267
    %v668 = vunpack.c.h.b16 %v267
    %v669 = vunpack.c.l.b16 %v268
    %v670 = vunpack.c.h.b16 %v268
    %v671 = vunpack.c.l.b16 %v269
    %v672 = vunpack.c.h.b16 %v269
    %v673 = vunpack.c.l.b16 %v270
    %v674 = vunpack.c.h.b16 %v270
    %v675 = vunpack.c.l.b16 %v271
    %v676 = vunpack.c.h.b16 %v271
    %v677 = vunpack.c.l.b16 %v272
    %v678 = vunpack.c.h.b16 %v272
    %v679 = vunpack.c.l.b16 %v273
    %v680 = vunpack.c.h.b16 %v273
    %v681 = vunpack.c.l.b16 %v274
    %v682 = vunpack.c.h.b16 %v274
    %v683 = vunpack.c.l.b16 %v275
    %v684 = vunpack.c.h.b16 %v275
    %v685 = vunpack.c.l.b16 %v276
    %v686 = vunpack.c.h.b16 %v276
    %v687 = vunpack.c.l.b16 %v277
    %v688 = vunpack.c.h.b16 %v277
    %v689 = vunpack.c.l.b16 %v278
    %v690 = vunpack.c.h.b16 %v278
    %v691 = vunpack.c.l.b16 %v279
    %v692 = vunpack.c.h.b16 %v279
    %v693 = vunpack.c.l.b16 %v280
    %v694 = vunpack.c.h.b16 %v280
    %v695 = vunpack.c.l.b16 %v281
    %v696 = vunpack.c.h.b16 %v281
    %v697 = vunpack.c.l.b16 %v282
    %v698 = vunpack.c.h.b16 %v282
    %v699 = vunpack.c.l.b16 %v283
    %v700 = vunpack.c.h.b16 %v283
    %v701 = vunpack.c.l.b16 %v284
    %v702 = vunpack.c.h.b16 %v284
    %v703 = vunpack.c.l.b16 %v285
    %v704 = vunpack.c.h.b16 %v285
    %v705 = vunpack.c.l.b16 %v286
    %v706 = vunpack.c.h.b16 %v286
    %v707 = vunpack.c.l.b16 %v287
    %v708 = vunpack.c.h.b16 %v287
    %v709 = vunpack.c.l.b16 %v288
    %v710 = vunpack.c.h.b16 %v288
    %v711 = vunpack.c.l.b16 %v289
    %v712 = vunpack.c.h.b16 %v289
    %v713 = vunpack.c.l.b16 %v290
    %v714 = vunpack.c.h.b16 %v290
    %v715 = vunpack.c.l.b16 %v291
    %v716 = vunpack.c.h.b16 %v291
    %v717 = vunpack.c.l.b16 %v292
    %v718 = vunpack.c.h.b16 %v292
    %v719 = vunpack.c.l.b16 %v293
    %v720 = vunpack.c.h.b16 %v293
    %v721 = vunpack.c.l.b16 %v294
    %v722 = vunpack.c.h.b16 %v294
    %v723 = vunpack.c.l.b16 %v295
    %v724 = vunpack.c.h.b16 %v295
    %v725 = vunpack.c.l.b16 %v296
    %v726 = vunpack.c.h.b16 %v296
    %v727 = vunpack.c.l.b16 %v297
    %v728 = vunpack.c.h.b16 %v297
    %v729 = vunpack.c.l.b16 %v298
    %v730 = vunpack.c.h.b16 %v298
    %v731 = vunpack.c.l.b16 %v299
    %v732 = vunpack.c.h.b16 %v299
    %v733 = vunpack.c.l.b16 %v300
    %v734 = vunpack.c.h.b16 %v300
    %v735 = vunpack.c.l.b16 %v301
    %v736 = vunpack.c.h.b16 %v301
    %v737 = vunpack.c.l.b16 %v302
    %v738 = vunpack.c.h.b16 %v302
    %v739 = vunpack.c.l.b16 %v303
    %v740 = vunpack.c.h.b16 %v303
    %v741 = vunpack.c.l.b16 %v304
    %v742 = vunpack.c.h.b16 %v304
    %v743 = vunpack.c.l.b16 %v305
    %v744 = vunpack.c.h.b16 %v305
    %v745 = vunpack.c.l.b16 %v306
    %v746 = vunpack.c.h.b16 %v306
    %v747 = vunpack.c.l.b16 %v307
    %v748 = vunpack.c.h.b16 %v307
    %v749 = vunpack.c.l.b16 %v308
    %v750 = vunpack.c.h.b16 %v308
    %v751 = vunpack.c.l.b16 %v309
    %v752 = vunpack.c.h.b16 %v309
    %v753 = vunpack.c.l.b16 %v310
    %v754 = vunpack.c.h.b16 %v310
    %v755 = vunpack.c.l.b16 %v311
    %v756 = vunpack.c.h.b16 %v311
    %v757 = vunpack.c.l.b16 %v312
    %v758 = vunpack.c.h.b16 %v312
    %v759 = vunpack.c.l.b16 %v313
    %v760 = vunpack.c.h.b16 %v313
    %v761 = vunpack.c.l.b16 %v314
    %v762 = vunpack.c.h.b16 %v314
    %v763 = vunpack.c.l.b16 %v315
    %v764 = vunpack.c.h.b16 %v315
    %v765 = vunpack.c.l.b16 %v316
    %v766 = vunpack.c.h.b16 %v316
    %v767 = vunpack.c.l.b16 %v317
    %v768 = vunpack.c.h.b16 %v317
    %v769 = vunpack.c.l.b16 %v318
    %v770 = vunpack.c.h.b16 %v318
    %v771 = vunpack.c.l.b16 %v319
    %v772 = vunpack.c.h.b16 %v319
    %v773 = vunpack.c.l.b16 %v320
    %v774 = vunpack.c.h.b16 %v320
    %v775 = vunpack.c.l.b16 %v321
    %v776 = vunpack.c.h.b16 %v321
    %v777 = vunpack.c.l.b16 %v322
    %v778 = vunpack.c.h.b16 %v322
    %v779 = vunpack.c.l.b16 %v323
    %v780 = vunpack.c.h.b16 %v323
    %v781 = vunpack.c.l.b16 %v324
    %v782 = vunpack.c.h.b16 %v324
    %v783 = vunpack.c.l.b16 %v325
    %v784 = vunpack.c.h.b16 %v325
    %v785 = vunpack.c.l.b16 %v326
    %v786 = vunpack.c.h.b16 %v326
    %v787 = vunpack.c.l.b16 %v327
    %v788 = vunpack.c.h.b16 %v327
    %v789 = vunpack.c.l.b16 %v328
    %v790 = vunpack.c.h.b16 %v328
    %v791 = vunpack.c.l.b16 %v329
    %v792 = vunpack.c.h.b16 %v329
    %v793 = vunpack.c.l.b16 %v330
    %v794 = vunpack.c.h.b16 %v330
    %v795 = vunpack.c.l.b16 %v331
    %v796 = vunpack.c.h.b16 %v331
    %v797 = vunpack.c.l.b16 %v332
    %v798 = vunpack.c.h.b16 %v332
    %v799 = vunpack.c.l.b16 %v333
    %v800 = vunpack.c.h.b16 %v333
    %v801 = vunpack.c.l.b16 %v334
    %v802 = vunpack.c.h.b16 %v334
    %v803 = vpack.c.b16 %v563, %v547
    %v804 = vpack.c.b16 %v564, %v548
    %v805 = vpack.c.b16 %v565, %v549
    %v806 = vpack.c.b16 %v566, %v550
    %v807 = vpack.c.b16 %v567, %v551
    %v808 = vpack.c.b16 %v568, %v552
    %v809 = vpack.c.b16 %v569, %v553
    %v810 = vpack.c.b16 %v570, %v554
    %v811 = vpack.c.b16 %v571, %v555
    %v812 = vpack.c.b16 %v572, %v556
    %v813 = vpack.c.b16 %v573, %v557
    %v814 = vpack.c.b16 %v574, %v558
    %v815 = vpack.c.b16 %v575, %v559
    %v816 = vpack.c.b16 %v576, %v560
    %v817 = vpack.c.b16 %v577, %v561
    %v818 = vpack.c.b16 %v578, %v562
    %v819 = vpack.c.b16 %v595, %v579
    %v820 = vpack.c.b16 %v596, %v580
    %v821 = vpack.c.b16 %v597, %v581
    %v822 = vpack.c.b16 %v598, %v582
    %v823 = vpack.c.b16 %v599, %v583
    %v824 = vpack.c.b16 %v600, %v584
    %v825 = vpack.c.b16 %v601, %v585
    %v826 = vpack.c.b16 %v602, %v586
    %v827 = vpack.c.b16 %v603, %v587
    %v828 = vpack.c.b16 %v604, %v588
    %v829 = vpack.c.b16 %v605, %v589
    %v830 = vpack.c.b16 %v606, %v590
    %v831 = vpack.c.b16 %v607, %v591
    %v832 = vpack.c.b16 %v608, %v592
    %v833 = vpack.c.b16 %v609, %v593
    %v834 = vpack.c.b16 %v610, %v594
    %v835 = vpack.c.b16 %v627, %v611
    %v836 = vpack.c.b16 %v628, %v612
    %v837 = vpack.c.b16 %v629, %v613
    %v838 = vpack.c.b16 %v630, %v614
    %v839 = vpack.c.b16 %v631, %v615
    %v840 = vpack.c.b16 %v632, %v616
    %v841 = vpack.c.b16 %v633, %v617
    %v842 = vpack.c.b16 %v634, %v618
    %v843 = vpack.c.b16 %v635, %v619
    %v844 = vpack.c.b16 %v636, %v620
    %v845 = vpack.c.b16 %v637, %v621
    %v846 = vpack.c.b16 %v638, %v622
    %v847 = vpack.c.b16 %v639, %v623
    %v848 = vpack.c.b16 %v640, %v624
    %v849 = vpack.c.b16 %v641, %v625
    %v850 = vpack.c.b16 %v642, %v626
    %v851 = vpack.c.b16 %v659, %v643
    %v852 = vpack.c.b16 %v660, %v644
    %v853 = vpack.c.b16 %v661, %v645
    %v854 = vpack.c.b16 %v662, %v646
    %v855 = vpack.c.b16 %v663, %v647
    %v856 = vpack.c.b16 %v664, %v648
    %v857 = vpack.c.b16 %v665, %v649
    %v858 = vpack.c.b16 %v666, %v650
    %v859 = vpack.c.b16 %v667, %v651
    %v860 = vpack.c.b16 %v668, %v652
    %v861 = vpack.c.b16 %v669, %v653
    %v862 = vpack.c.b16 %v670, %v654
    %v863 = vpack.c.b16 %v671, %v655
    %v864 = vpack.c.b16 %v672, %v656
    %v865 = vpack.c.b16 %v673, %v657
    %v866 = vpack.c.b16 %v674, %v658
    %v867 = vpack.c.b16 %v691, %v675
    %v868 = vpack.c.b16 %v692, %v676
    %v869 = vpack.c.b16 %v693, %v677
    %v870 = vpack.c.b16 %v694, %v678
    %v871 = vpack.c.b16 %v695, %v679
    %v872 = vpack.c.b16 %v696, %v680
    %v873 = vpack.c.b16 %v697, %v681
    %v874 = vpack.c.b16 %v698, %v682
    %v875 = vpack.c.b16 %v699, %v683
    %v876 = vpack.c.b16 %v700, %v684
    %v877 = vpack.c.b16 %v701, %v685
    %v878 = vpack.c.b16 %v702, %v686
    %v879 = vpack.c.b16 %v703, %v687
    %v880 = vpack.c.b16 %v704, %v688
    %v881 = vpack.c.b16 %v705, %v689
    %v882 = vpack.c.b16 %v706, %v690
    %v883 = vpack.c.b16 %v723, %v707
    %v884 = vpack.c.b16 %v724, %v708
    %v885 = vpack.c.b16 %v725, %v709
    %v886 = vpack.c.b16 %v726, %v710
    %v887 = vpack.c.b16 %v727, %v711
    %v888 = vpack.c.b16 %v728, %v712
    %v889 = vpack.c.b16 %v729, %v713
    %v890 = vpack.c.b16 %v730, %v714
    %v891 = vpack.c.b16 %v731, %v715
    %v892 = vpack.c.b16 %v732, %v716
    %v893 = vpack.c.b16 %v733, %v717
    %v894 = vpack.c.b16 %v734, %v718
    %v895 = vpack.c.b16 %v735, %v719
    %v896 = vpack.c.b16 %v736, %v720
    %v897 = vpack.c.b16 %v737, %v721
    %v898 = vpack.c.b16 %v738, %v722
    %v899 = vpack.c.b16 %v755, %v739
    %v900 = vpack.c.b16 %v756, %v740
    %v901 = vpack.c.b16 %v757, %v741
    %v902 = vpack.c.b16 %v758, %v742
    %v903 = vpack.c.b16 %v759, %v743
    %v904 = vpack.c.b16 %v760, %v744
    %v905 = vpack.c.b16 %v761, %v745
    %v906 = vpack.c.b16 %v762, %v746
    %v907 = vpack.c.b16 %v763, %v747
    %v908 = vpack.c.b16 %v764, %v748
    %v909 = vpack.c.b16 %v765, %v749
    %v910 = vpack.c.b16 %v766, %v750
    %v911 = vpack.c.b16 %v767, %v751
    %v912 = vpack.c.b16 %v768, %v752
    %v913 = vpack.c.b16 %v769, %v753
    %v914 = vpack.c.b16 %v770, %v754
    %v915 = vpack.c.b16 %v787, %v771
    %v916 = vpack.c.b16 %v788, %v772
    %v917 = vpack.c.b16 %v789, %v773
    %v918 = vpack.c.b16 %v790, %v774
    %v919 = vpack.c.b16 %v791, %v775
    %v920 = vpack.c.b16 %v792, %v776
    %v921 = vpack.c.b16 %v793, %v777
    %v922 = vpack.c.b16 %v794, %v778
    %v923 = vpack.c.b16 %v795, %v779
    %v924 = vpack.c.b16 %v796, %v780
    %v925 = vpack.c.b16 %v797, %v781
    %v926 = vpack.c.b16 %v798, %v782
    %v927 = vpack.c.b16 %v799, %v783
    %v928 = vpack.c.b16 %v800, %v784
    %v929 = vpack.c.b16 %v801, %v785
    %v930 = vpack.c.b16 %v802, %v786
    %1059 = vmatprep.subr.bf16.mxu0 %v804
    %1060 = vmatpush1.bf16.msra.mxu0 %v803
    %1061 = vmatprep.subr.bf16.mxu0 %v820
    %1062 = vmatpush1.bf16.msra.mxu0 %v819
    %1063 = vmatprep.subr.bf16.mxu0 %v836
    %1064 = vmatpush1.bf16.msra.mxu0 %v835
    %1065 = vmatprep.subr.bf16.mxu0 %v852
    %1066 = vmatpush1.bf16.msra.mxu0 %v851
    %1067 = vmatprep.subr.bf16.mxu0 %v868
    %1068 = vmatpush1.bf16.msra.mxu0 %v867
    %1069 = vmatprep.subr.bf16.mxu0 %v884
    %1070 = vmatpush1.bf16.msra.mxu0 %v883
    %1071 = vmatprep.subr.bf16.mxu0 %v900
    %1072 = vmatpush1.bf16.msra.mxu0 %v899
    %1073 = vmatprep.subr.bf16.mxu0 %v916
    %1074 = vmatpush1.bf16.msra.mxu0 %v915
    %1075 = vmatprep.subr.bf16.mxu0 0
    %1076 = vmatpush1.bf16.msra.mxu0 0
    %1077 = vmatprep.subr.bf16.mxu0 0
    %1078 = vmatpush1.bf16.msra.mxu0 0
    %1079 = vmatprep.subr.bf16.mxu0 0
    %1080 = vmatpush1.bf16.msra.mxu0 0
    %1081 = vmatprep.subr.bf16.mxu0 0
    %1082 = vmatpush1.bf16.msra.mxu0 0
    %1083 = vmatprep.subr.bf16.mxu0 0
    %1084 = vmatpush1.bf16.msra.mxu0 0
    %1085 = vmatprep.subr.bf16.mxu0 0
    %1086 = vmatpush1.bf16.msra.mxu0 0
    %1087 = vmatprep.subr.bf16.mxu0 0
    %1088 = vmatpush1.bf16.msra.mxu0 0
    %1089 = vmatprep.subr.bf16.mxu0 0
    %1090 = vmatpush1.bf16.msra.mxu0 0
    %1091 = vmatprep.mubr.bf16.mxu0 0
    %1092 = vmatmul.mubr.bf16.gmra.mrb[0].mxu0 %v206
    %v1093 = vpop.f32.mrb[0].mxu0
    %v1094 = vadd.f32 %v342, %v1093
    %v1095 = vpop.f32.mrb[0].mxu0
    %v1096 = vadd.f32 %v346, %v1095
    %v1097 = vpop.f32.mrb[0].mxu0
    %v1098 = vpop.f32.mrb[0].mxu0
    %1099 = vdwg.mxu0
    %1100 = vmatprep.subr.bf16.mxu0 %v806
    %1101 = vmatpush1.bf16.msra.mxu0 %v805
    %1102 = vmatprep.subr.bf16.mxu0 %v822
    %1103 = vmatpush1.bf16.msra.mxu0 %v821
    %1104 = vmatprep.subr.bf16.mxu0 %v838
    %1105 = vmatpush1.bf16.msra.mxu0 %v837
    %1106 = vmatprep.subr.bf16.mxu0 %v854
    %1107 = vmatpush1.bf16.msra.mxu0 %v853
    %1108 = vmatprep.subr.bf16.mxu0 %v870
    %1109 = vmatpush1.bf16.msra.mxu0 %v869
    %1110 = vmatprep.subr.bf16.mxu0 %v886
    %1111 = vmatpush1.bf16.msra.mxu0 %v885
    %1112 = vmatprep.subr.bf16.mxu0 %v902
    %1113 = vmatpush1.bf16.msra.mxu0 %v901
    %1114 = vmatprep.subr.bf16.mxu0 %v918
    %1115 = vmatpush1.bf16.msra.mxu0 %v917
    %1116 = vmatprep.subr.bf16.mxu0 0
    %1117 = vmatpush1.bf16.msra.mxu0 0
    %1118 = vmatprep.subr.bf16.mxu0 0
    %1119 = vmatpush1.bf16.msra.mxu0 0
    %1120 = vmatprep.subr.bf16.mxu0 0
    %1121 = vmatpush1.bf16.msra.mxu0 0
    %1122 = vmatprep.subr.bf16.mxu0 0
    %1123 = vmatpush1.bf16.msra.mxu0 0
    %1124 = vmatprep.subr.bf16.mxu0 0
    %1125 = vmatpush1.bf16.msra.mxu0 0
    %1126 = vmatprep.subr.bf16.mxu0 0
    %1127 = vmatpush1.bf16.msra.mxu0 0
    %1128 = vmatprep.subr.bf16.mxu0 0
    %1129 = vmatpush1.bf16.msra.mxu0 0
    %1130 = vmatprep.subr.bf16.mxu0 0
    %1131 = vmatpush1.bf16.msra.mxu0 0
    %1132 = vmatprep.mubr.bf16.mxu0 0
    %1133 = vmatmul.mubr.bf16.gmra.mrb[0].mxu0 %v206
    %v1134 = vpop.f32.mrb[0].mxu0
    %v1135 = vadd.f32 %v350, %v1134
    %v1136 = vpop.f32.mrb[0].mxu0
    %v1137 = vadd.f32 %v354, %v1136
    %v1138 = vpop.f32.mrb[0].mxu0
    %v1139 = vpop.f32.mrb[0].mxu0
    %1140 = vdwg.mxu0
    %1141 = vmatprep.subr.bf16.mxu0 %v808
    %1142 = vmatpush1.bf16.msra.mxu0 %v807
    %1143 = vmatprep.subr.bf16.mxu0 %v824
    %1144 = vmatpush1.bf16.msra.mxu0 %v823
    %1145 = vmatprep.subr.bf16.mxu0 %v840
    %1146 = vmatpush1.bf16.msra.mxu0 %v839
    %1147 = vmatprep.subr.bf16.mxu0 %v856
    %1148 = vmatpush1.bf16.msra.mxu0 %v855
    %1149 = vmatprep.subr.bf16.mxu0 %v872
    %1150 = vmatpush1.bf16.msra.mxu0 %v871
    %1151 = vmatprep.subr.bf16.mxu0 %v888
    %1152 = vmatpush1.bf16.msra.mxu0 %v887
    %1153 = vmatprep.subr.bf16.mxu0 %v904
    %1154 = vmatpush1.bf16.msra.mxu0 %v903
    %1155 = vmatprep.subr.bf16.mxu0 %v920
    %1156 = vmatpush1.bf16.msra.mxu0 %v919
    %1157 = vmatprep.subr.bf16.mxu0 0
    %1158 = vmatpush1.bf16.msra.mxu0 0
    %1159 = vmatprep.subr.bf16.mxu0 0
    %1160 = vmatpush1.bf16.msra.mxu0 0
    %1161 = vmatprep.subr.bf16.mxu0 0
    %1162 = vmatpush1.bf16.msra.mxu0 0
    %1163 = vmatprep.subr.bf16.mxu0 0
    %1164 = vmatpush1.bf16.msra.mxu0 0
    %1165 = vmatprep.subr.bf16.mxu0 0
    %1166 = vmatpush1.bf16.msra.mxu0 0
    %1167 = vmatprep.subr.bf16.mxu0 0
    %1168 = vmatpush1.bf16.msra.mxu0 0
    %1169 = vmatprep.subr.bf16.mxu0 0
    %1170 = vmatpush1.bf16.msra.mxu0 0
    %1171 = vmatprep.subr.bf16.mxu0 0
    %1172 = vmatpush1.bf16.msra.mxu0 0
    %1173 = vmatprep.mubr.bf16.mxu0 0
    %1174 = vmatmul.mubr.bf16.gmra.mrb[0].mxu0 %v206
    %v1175 = vpop.f32.mrb[0].mxu0
    %v1176 = vadd.f32 %v358, %v1175
    %v1177 = vpop.f32.mrb[0].mxu0
    %v1178 = vadd.f32 %v362, %v1177
    %v1179 = vpop.f32.mrb[0].mxu0
    %v1180 = vpop.f32.mrb[0].mxu0
    %1181 = vdwg.mxu0
    %1182 = vmatprep.subr.bf16.mxu0 %v810
    %1183 = vmatpush1.bf16.msra.mxu0 %v809
    %1184 = vmatprep.subr.bf16.mxu0 %v826
    %1185 = vmatpush1.bf16.msra.mxu0 %v825
    %1186 = vmatprep.subr.bf16.mxu0 %v842
    %1187 = vmatpush1.bf16.msra.mxu0 %v841
    %1188 = vmatprep.subr.bf16.mxu0 %v858
    %1189 = vmatpush1.bf16.msra.mxu0 %v857
    %1190 = vmatprep.subr.bf16.mxu0 %v874
    %1191 = vmatpush1.bf16.msra.mxu0 %v873
    %1192 = vmatprep.subr.bf16.mxu0 %v890
    %1193 = vmatpush1.bf16.msra.mxu0 %v889
    %1194 = vmatprep.subr.bf16.mxu0 %v906
    %1195 = vmatpush1.bf16.msra.mxu0 %v905
    %1196 = vmatprep.subr.bf16.mxu0 %v922
    %1197 = vmatpush1.bf16.msra.mxu0 %v921
    %1198 = vmatprep.subr.bf16.mxu0 0
    %1199 = vmatpush1.bf16.msra.mxu0 0
    %1200 = vmatprep.subr.bf16.mxu0 0
    %1201 = vmatpush1.bf16.msra.mxu0 0
    %1202 = vmatprep.subr.bf16.mxu0 0
    %1203 = vmatpush1.bf16.msra.mxu0 0
    %1204 = vmatprep.subr.bf16.mxu0 0
    %1205 = vmatpush1.bf16.msra.mxu0 0
    %1206 = vmatprep.subr.bf16.mxu0 0
    %1207 = vmatpush1.bf16.msra.mxu0 0
    %1208 = vmatprep.subr.bf16.mxu0 0
    %1209 = vmatpush1.bf16.msra.mxu0 0
    %1210 = vmatprep.subr.bf16.mxu0 0
    %1211 = vmatpush1.bf16.msra.mxu0 0
    %1212 = vmatprep.subr.bf16.mxu0 0
    %1213 = vmatpush1.bf16.msra.mxu0 0
    %1214 = vmatprep.mubr.bf16.mxu0 0
    %1215 = vmatmul.mubr.bf16.gmra.mrb[0].mxu0 %v206
    %v1216 = vpop.f32.mrb[0].mxu0
    %v1217 = vadd.f32 %v366, %v1216
    %v1218 = vpop.f32.mrb[0].mxu0
    %v1219 = vadd.f32 %v370, %v1218
    %v1220 = vpop.f32.mrb[0].mxu0
    %v1221 = vpop.f32.mrb[0].mxu0
    %1222 = vdwg.mxu0
    %1223 = vmatprep.subr.bf16.mxu0 %v812
    %1224 = vmatpush1.bf16.msra.mxu0 %v811
    %1225 = vmatprep.subr.bf16.mxu0 %v828
    %1226 = vmatpush1.bf16.msra.mxu0 %v827
    %1227 = vmatprep.subr.bf16.mxu0 %v844
    %1228 = vmatpush1.bf16.msra.mxu0 %v843
    %1229 = vmatprep.subr.bf16.mxu0 %v860
    %1230 = vmatpush1.bf16.msra.mxu0 %v859
    %1231 = vmatprep.subr.bf16.mxu0 %v876
    %1232 = vmatpush1.bf16.msra.mxu0 %v875
    %1233 = vmatprep.subr.bf16.mxu0 %v892
    %1234 = vmatpush1.bf16.msra.mxu0 %v891
    %1235 = vmatprep.subr.bf16.mxu0 %v908
    %1236 = vmatpush1.bf16.msra.mxu0 %v907
    %1237 = vmatprep.subr.bf16.mxu0 %v924
    %1238 = vmatpush1.bf16.msra.mxu0 %v923
    %1239 = vmatprep.subr.bf16.mxu0 0
    %1240 = vmatpush1.bf16.msra.mxu0 0
    %1241 = vmatprep.subr.bf16.mxu0 0
    %1242 = vmatpush1.bf16.msra.mxu0 0
    %1243 = vmatprep.subr.bf16.mxu0 0
    %1244 = vmatpush1.bf16.msra.mxu0 0
    %1245 = vmatprep.subr.bf16.mxu0 0
    %1246 = vmatpush1.bf16.msra.mxu0 0
    %1247 = vmatprep.subr.bf16.mxu0 0
    %1248 = vmatpush1.bf16.msra.mxu0 0
    %1249 = vmatprep.subr.bf16.mxu0 0
    %1250 = vmatpush1.bf16.msra.mxu0 0
    %1251 = vmatprep.subr.bf16.mxu0 0
    %1252 = vmatpush1.bf16.msra.mxu0 0
    %1253 = vmatprep.subr.bf16.mxu0 0
    %1254 = vmatpush1.bf16.msra.mxu0 0
    %1255 = vmatprep.mubr.bf16.mxu0 0
    %1256 = vmatmul.mubr.bf16.gmra.mrb[0].mxu0 %v206
    %v1257 = vpop.f32.mrb[0].mxu0
    %v1258 = vadd.f32 %v374, %v1257
    %v1259 = vpop.f32.mrb[0].mxu0
    %v1260 = vadd.f32 %v378, %v1259
    %v1261 = vpop.f32.mrb[0].mxu0
    %v1262 = vpop.f32.mrb[0].mxu0
    %1263 = vdwg.mxu0
    %1264 = vmatprep.subr.bf16.mxu0 %v814
    %1265 = vmatpush1.bf16.msra.mxu0 %v813
    %1266 = vmatprep.subr.bf16.mxu0 %v830
    %1267 = vmatpush1.bf16.msra.mxu0 %v829
    %1268 = vmatprep.subr.bf16.mxu0 %v846
    %1269 = vmatpush1.bf16.msra.mxu0 %v845
    %1270 = vmatprep.subr.bf16.mxu0 %v862
    %1271 = vmatpush1.bf16.msra.mxu0 %v861
    %1272 = vmatprep.subr.bf16.mxu0 %v878
    %1273 = vmatpush1.bf16.msra.mxu0 %v877
    %1274 = vmatprep.subr.bf16.mxu0 %v894
    %1275 = vmatpush1.bf16.msra.mxu0 %v893
    %1276 = vmatprep.subr.bf16.mxu0 %v910
    %1277 = vmatpush1.bf16.msra.mxu0 %v909
    %1278 = vmatprep.subr.bf16.mxu0 %v926
    %1279 = vmatpush1.bf16.msra.mxu0 %v925
    %1280 = vmatprep.subr.bf16.mxu0 0
    %1281 = vmatpush1.bf16.msra.mxu0 0
    %1282 = vmatprep.subr.bf16.mxu0 0
    %1283 = vmatpush1.bf16.msra.mxu0 0
    %1284 = vmatprep.subr.bf16.mxu0 0
    %1285 = vmatpush1.bf16.msra.mxu0 0
    %1286 = vmatprep.subr.bf16.mxu0 0
    %1287 = vmatpush1.bf16.msra.mxu0 0
    %1288 = vmatprep.subr.bf16.mxu0 0
    %1289 = vmatpush1.bf16.msra.mxu0 0
    %1290 = vmatprep.subr.bf16.mxu0 0
    %1291 = vmatpush1.bf16.msra.mxu0 0
    %1292 = vmatprep.subr.bf16.mxu0 0
    %1293 = vmatpush1.bf16.msra.mxu0 0
    %1294 = vmatprep.subr.bf16.mxu0 0
    %1295 = vmatpush1.bf16.msra.mxu0 0
    %1296 = vmatprep.mubr.bf16.mxu0 0
    %1297 = vmatmul.mubr.bf16.gmra.mrb[0].mxu0 %v206
    %v1298 = vpop.f32.mrb[0].mxu0
    %v1299 = vadd.f32 %v382, %v1298
    %v1300 = vpop.f32.mrb[0].mxu0
    %v1301 = vadd.f32 %v386, %v1300
    %v1302 = vpop.f32.mrb[0].mxu0
    %v1303 = vpop.f32.mrb[0].mxu0
    %1304 = vdwg.mxu0
    %1305 = vmatprep.subr.bf16.mxu0 %v816
    %1306 = vmatpush1.bf16.msra.mxu0 %v815
    %1307 = vmatprep.subr.bf16.mxu0 %v832
    %1308 = vmatpush1.bf16.msra.mxu0 %v831
    %1309 = vmatprep.subr.bf16.mxu0 %v848
    %1310 = vmatpush1.bf16.msra.mxu0 %v847
    %1311 = vmatprep.subr.bf16.mxu0 %v864
    %1312 = vmatpush1.bf16.msra.mxu0 %v863
    %1313 = vmatprep.subr.bf16.mxu0 %v880
    %1314 = vmatpush1.bf16.msra.mxu0 %v879
    %1315 = vmatprep.subr.bf16.mxu0 %v896
    %1316 = vmatpush1.bf16.msra.mxu0 %v895
    %1317 = vmatprep.subr.bf16.mxu0 %v912
    %1318 = vmatpush1.bf16.msra.mxu0 %v911
    %1319 = vmatprep.subr.bf16.mxu0 %v928
    %1320 = vmatpush1.bf16.msra.mxu0 %v927
    %1321 = vmatprep.subr.bf16.mxu0 0
    %1322 = vmatpush1.bf16.msra.mxu0 0
    %1323 = vmatprep.subr.bf16.mxu0 0
    %1324 = vmatpush1.bf16.msra.mxu0 0
    %1325 = vmatprep.subr.bf16.mxu0 0
    %1326 = vmatpush1.bf16.msra.mxu0 0
    %1327 = vmatprep.subr.bf16.mxu0 0
    %1328 = vmatpush1.bf16.msra.mxu0 0
    %1329 = vmatprep.subr.bf16.mxu0 0
    %1330 = vmatpush1.bf16.msra.mxu0 0
    %1331 = vmatprep.subr.bf16.mxu0 0
    %1332 = vmatpush1.bf16.msra.mxu0 0
    %1333 = vmatprep.subr.bf16.mxu0 0
    %1334 = vmatpush1.bf16.msra.mxu0 0
    %1335 = vmatprep.subr.bf16.mxu0 0
    %1336 = vmatpush1.bf16.msra.mxu0 0
    %1337 = vmatprep.mubr.bf16.mxu0 0
    %1338 = vmatmul.mubr.bf16.gmra.mrb[0].mxu0 %v206
    %v1339 = vpop.f32.mrb[0].mxu0
    %v1340 = vadd.f32 %v390, %v1339
    %v1341 = vpop.f32.mrb[0].mxu0
    %v1342 = vadd.f32 %v394, %v1341
    %v1343 = vpop.f32.mrb[0].mxu0
    %v1344 = vpop.f32.mrb[0].mxu0
    %1345 = vdwg.mxu0
    %1346 = vmatprep.subr.bf16.mxu0 %v818
    %1347 = vmatpush1.bf16.msra.mxu0 %v817
    %1348 = vmatprep.subr.bf16.mxu0 %v834
    %1349 = vmatpush1.bf16.msra.mxu0 %v833
    %1350 = vmatprep.subr.bf16.mxu0 %v850
    %1351 = vmatpush1.bf16.msra.mxu0 %v849
    %1352 = vmatprep.subr.bf16.mxu0 %v866
    %1353 = vmatpush1.bf16.msra.mxu0 %v865
    %1354 = vmatprep.subr.bf16.mxu0 %v882
    %1355 = vmatpush1.bf16.msra.mxu0 %v881
    %1356 = vmatprep.subr.bf16.mxu0 %v898
    %1357 = vmatpush1.bf16.msra.mxu0 %v897
    %1358 = vmatprep.subr.bf16.mxu0 %v914
    %1359 = vmatpush1.bf16.msra.mxu0 %v913
    %1360 = vmatprep.subr.bf16.mxu0 %v930
    %1361 = vmatpush1.bf16.msra.mxu0 %v929
    %1362 = vmatprep.subr.bf16.mxu0 0
    %1363 = vmatpush1.bf16.msra.mxu0 0
    %1364 = vmatprep.subr.bf16.mxu0 0
    %1365 = vmatpush1.bf16.msra.mxu0 0
    %1366 = vmatprep.subr.bf16.mxu0 0
    %1367 = vmatpush1.bf16.msra.mxu0 0
    %1368 = vmatprep.subr.bf16.mxu0 0
    %1369 = vmatpush1.bf16.msra.mxu0 0
    %1370 = vmatprep.subr.bf16.mxu0 0
    %1371 = vmatpush1.bf16.msra.mxu0 0
    %1372 = vmatprep.subr.bf16.mxu0 0
    %1373 = vmatpush1.bf16.msra.mxu0 0
    %1374 = vmatprep.subr.bf16.mxu0 0
    %1375 = vmatpush1.bf16.msra.mxu0 0
    %1376 = vmatprep.subr.bf16.mxu0 0
    %1377 = vmatpush1.bf16.msra.mxu0 0
    %1378 = vmatprep.mubr.bf16.mxu0 0
    %1379 = vmatmul.mubr.bf16.gmra.mrb[0].mxu0 %v206
    %v1380 = vpop.f32.mrb[0].mxu0
    %v1381 = vadd.f32 %v398, %v1380
    %v1382 = vpop.f32.mrb[0].mxu0
    %v1383 = vadd.f32 %v402, %v1382
    %v1384 = vpop.f32.mrb[0].mxu0
    %v1385 = vpop.f32.mrb[0].mxu0
    %1386 = vdwg.mxu0
    %v1387 = vmax.f32 %v1094, 0.0
    %v1388 = vmax.f32 %v1096, 0.0
    %v1389 = vmax.f32 %v1135, 0.0
    %v1390 = vmax.f32 %v1137, 0.0
    %v1391 = vmax.f32 %v1176, 0.0
    %v1392 = vmax.f32 %v1178, 0.0
    %v1393 = vmax.f32 %v1217, 0.0
    %v1394 = vmax.f32 %v1219, 0.0
    %v1395 = vmax.f32 %v1258, 0.0
    %v1396 = vmax.f32 %v1260, 0.0
    %v1397 = vmax.f32 %v1299, 0.0
    %v1398 = vmax.f32 %v1301, 0.0
    %v1399 = vmax.f32 %v1340, 0.0
    %v1400 = vmax.f32 %v1342, 0.0
    %v1401 = vmax.f32 %v1381, 0.0
    %v1402 = vmax.f32 %v1383, 0.0
    %v1403 = vpack.c.bf16 %v1387, %v1387
    %v1404 = vpack.c.bf16 %v1388, %v1388
    %v1405 = vpack.c.bf16 %v1389, %v1389
    %v1406 = vpack.c.bf16 %v1390, %v1390
    %v1407 = vpack.c.bf16 %v1391, %v1391
    %v1408 = vpack.c.bf16 %v1392, %v1392
    %v1409 = vpack.c.bf16 %v1393, %v1393
    %v1410 = vpack.c.bf16 %v1394, %v1394
    %v1411 = vpack.c.bf16 %v1395, %v1395
    %v1412 = vpack.c.bf16 %v1396, %v1396
    %v1413 = vpack.c.bf16 %v1397, %v1397
    %v1414 = vpack.c.bf16 %v1398, %v1398
    %v1415 = vpack.c.bf16 %v1399, %v1399
    %v1416 = vpack.c.bf16 %v1400, %v1400
    %v1417 = vpack.c.bf16 %v1401, %v1401
    %v1418 = vpack.c.bf16 %v1402, %v1402
    %v1419 = vld [vmem:[#allocation10] sm:$0xf]
    %v1420 = vld [vmem:[#allocation10 + $0x4] sm:$0xf]
    %v1421 = vld [vmem:[#allocation10 + $0x8] sm:$0xf]
    %v1422 = vld [vmem:[#allocation10 + $0xc] sm:$0xf]
    %v1423 = vld [vmem:[#allocation10 + $0x10] sm:$0xf]
    %v1424 = vld [vmem:[#allocation10 + $0x14] sm:$0xf]
    %v1425 = vld [vmem:[#allocation10 + $0x18] sm:$0xf]
    %v1426 = vld [vmem:[#allocation10 + $0x1c] sm:$0xf]
    %v1427 = vld [vmem:[#allocation10 + $0x20] sm:$0xf]
    %v1428 = vld [vmem:[#allocation10 + $0x24] sm:$0xf]
    %v1429 = vld [vmem:[#allocation10 + $0x28] sm:$0xf]
    %v1430 = vld [vmem:[#allocation10 + $0x2c] sm:$0xf]
    %v1431 = vld [vmem:[#allocation10 + $0x30] sm:$0xf]
    %v1432 = vld [vmem:[#allocation10 + $0x34] sm:$0xf]
    %v1433 = vld [vmem:[#allocation10 + $0x38] sm:$0xf]
    %v1434 = vld [vmem:[#allocation10 + $0x3c] sm:$0xf]
    %v1435 = vld [vmem:[#allocation10 + $0x40] sm:$0xf]
    %v1436 = vld [vmem:[#allocation10 + $0x44] sm:$0xf]
    %v1437 = vld [vmem:[#allocation10 + $0x48] sm:$0xf]
    %v1438 = vld [vmem:[#allocation10 + $0x4c] sm:$0xf]
    %v1439 = vld [vmem:[#allocation10 + $0x50] sm:$0xf]
    %v1440 = vld [vmem:[#allocation10 + $0x54] sm:$0xf]
    %v1441 = vld [vmem:[#allocation10 + $0x58] sm:$0xf]
    %v1442 = vld [vmem:[#allocation10 + $0x5c] sm:$0xf]
    %v1443 = vld [vmem:[#allocation10 + $0x60] sm:$0xf]
    %v1444 = vld [vmem:[#allocation10 + $0x64] sm:$0xf]
    %v1445 = vld [vmem:[#allocation10 + $0x68] sm:$0xf]
    %v1446 = vld [vmem:[#allocation10 + $0x6c] sm:$0xf]
    %v1447 = vld [vmem:[#allocation10 + $0x70] sm:$0xf]
    %v1448 = vld [vmem:[#allocation10 + $0x74] sm:$0xf]
    %v1449 = vld [vmem:[#allocation10 + $0x78] sm:$0xf]
    %v1450 = vld [vmem:[#allocation10 + $0x7c] sm:$0xf]
    %v1451 = vld [vmem:[#allocation10 + $0x80] sm:$0xf]
    %v1452 = vld [vmem:[#allocation10 + $0x84] sm:$0xf]
    %v1453 = vld [vmem:[#allocation10 + $0x88] sm:$0xf]
    %v1454 = vld [vmem:[#allocation10 + $0x8c] sm:$0xf]
    %v1455 = vld [vmem:[#allocation10 + $0x90] sm:$0xf]
    %v1456 = vld [vmem:[#allocation10 + $0x94] sm:$0xf]
    %v1457 = vld [vmem:[#allocation10 + $0x98] sm:$0xf]
    %v1458 = vld [vmem:[#allocation10 + $0x9c] sm:$0xf]
    %v1459 = vld [vmem:[#allocation10 + $0xa0] sm:$0xf]
    %v1460 = vld [vmem:[#allocation10 + $0xa4] sm:$0xf]
    %v1461 = vld [vmem:[#allocation10 + $0xa8] sm:$0xf]
    %v1462 = vld [vmem:[#allocation10 + $0xac] sm:$0xf]
    %v1463 = vld [vmem:[#allocation10 + $0xb0] sm:$0xf]
    %v1464 = vld [vmem:[#allocation10 + $0xb4] sm:$0xf]
    %v1465 = vld [vmem:[#allocation10 + $0xb8] sm:$0xf]
    %v1466 = vld [vmem:[#allocation10 + $0xbc] sm:$0xf]
    %v1467 = vld [vmem:[#allocation10 + $0xc0] sm:$0xf]
    %v1468 = vld [vmem:[#allocation10 + $0xc4] sm:$0xf]
    %v1469 = vld [vmem:[#allocation10 + $0xc8] sm:$0xf]
    %v1470 = vld [vmem:[#allocation10 + $0xcc] sm:$0xf]
    %v1471 = vld [vmem:[#allocation10 + $0xd0] sm:$0xf]
    %v1472 = vld [vmem:[#allocation10 + $0xd4] sm:$0xf]
    %v1473 = vld [vmem:[#allocation10 + $0xd8] sm:$0xf]
    %v1474 = vld [vmem:[#allocation10 + $0xdc] sm:$0xf]
    %v1475 = vld [vmem:[#allocation10 + $0xe0] sm:$0xf]
    %v1476 = vld [vmem:[#allocation10 + $0xe4] sm:$0xf]
    %v1477 = vld [vmem:[#allocation10 + $0xe8] sm:$0xf]
    %v1478 = vld [vmem:[#allocation10 + $0xec] sm:$0xf]
    %v1479 = vld [vmem:[#allocation10 + $0xf0] sm:$0xf]
    %v1480 = vld [vmem:[#allocation10 + $0xf4] sm:$0xf]
    %v1481 = vld [vmem:[#allocation10 + $0xf8] sm:$0xf]
    %v1482 = vld [vmem:[#allocation10 + $0xfc] sm:$0xf]
    %v1483 = vld [vmem:[#allocation10 + $0x100] sm:$0xf]
    %v1484 = vld [vmem:[#allocation10 + $0x104] sm:$0xf]
    %v1485 = vld [vmem:[#allocation10 + $0x108] sm:$0xf]
    %v1486 = vld [vmem:[#allocation10 + $0x10c] sm:$0xf]
    %v1487 = vld [vmem:[#allocation10 + $0x110] sm:$0xf]
    %v1488 = vld [vmem:[#allocation10 + $0x114] sm:$0xf]
    %v1489 = vld [vmem:[#allocation10 + $0x118] sm:$0xf]
    %v1490 = vld [vmem:[#allocation10 + $0x11c] sm:$0xf]
    %v1491 = vld [vmem:[#allocation10 + $0x120] sm:$0xf]
    %v1492 = vld [vmem:[#allocation10 + $0x124] sm:$0xf]
    %v1493 = vld [vmem:[#allocation10 + $0x128] sm:$0xf]
    %v1494 = vld [vmem:[#allocation10 + $0x12c] sm:$0xf]
    %v1495 = vld [vmem:[#allocation10 + $0x130] sm:$0xf]
    %v1496 = vld [vmem:[#allocation10 + $0x134] sm:$0xf]
    %v1497 = vld [vmem:[#allocation10 + $0x138] sm:$0xf]
    %v1498 = vld [vmem:[#allocation10 + $0x13c] sm:$0xf]
    %v1499 = vld [vmem:[#allocation10 + $0x140] sm:$0xf]
    %v1500 = vld [vmem:[#allocation10 + $0x144] sm:$0xf]
    %v1501 = vld [vmem:[#allocation10 + $0x148] sm:$0xf]
    %v1502 = vld [vmem:[#allocation10 + $0x14c] sm:$0xf]
    %v1503 = vld [vmem:[#allocation10 + $0x150] sm:$0xf]
    %v1504 = vld [vmem:[#allocation10 + $0x154] sm:$0xf]
    %v1505 = vld [vmem:[#allocation10 + $0x158] sm:$0xf]
    %v1506 = vld [vmem:[#allocation10 + $0x15c] sm:$0xf]
    %v1507 = vld [vmem:[#allocation10 + $0x160] sm:$0xf]
    %v1508 = vld [vmem:[#allocation10 + $0x164] sm:$0xf]
    %v1509 = vld [vmem:[#allocation10 + $0x168] sm:$0xf]
    %v1510 = vld [vmem:[#allocation10 + $0x16c] sm:$0xf]
    %v1511 = vld [vmem:[#allocation10 + $0x170] sm:$0xf]
    %v1512 = vld [vmem:[#allocation10 + $0x174] sm:$0xf]
    %v1513 = vld [vmem:[#allocation10 + $0x178] sm:$0xf]
    %v1514 = vld [vmem:[#allocation10 + $0x17c] sm:$0xf]
    %v1515 = vld [vmem:[#allocation10 + $0x180] sm:$0xf]
    %v1516 = vld [vmem:[#allocation10 + $0x184] sm:$0xf]
    %v1517 = vld [vmem:[#allocation10 + $0x188] sm:$0xf]
    %v1518 = vld [vmem:[#allocation10 + $0x18c] sm:$0xf]
    %v1519 = vld [vmem:[#allocation10 + $0x190] sm:$0xf]
    %v1520 = vld [vmem:[#allocation10 + $0x194] sm:$0xf]
    %v1521 = vld [vmem:[#allocation10 + $0x198] sm:$0xf]
    %v1522 = vld [vmem:[#allocation10 + $0x19c] sm:$0xf]
    %v1523 = vld [vmem:[#allocation10 + $0x1a0] sm:$0xf]
    %v1524 = vld [vmem:[#allocation10 + $0x1a4] sm:$0xf]
    %v1525 = vld [vmem:[#allocation10 + $0x1a8] sm:$0xf]
    %v1526 = vld [vmem:[#allocation10 + $0x1ac] sm:$0xf]
    %v1527 = vld [vmem:[#allocation10 + $0x1b0] sm:$0xf]
    %v1528 = vld [vmem:[#allocation10 + $0x1b4] sm:$0xf]
    %v1529 = vld [vmem:[#allocation10 + $0x1b8] sm:$0xf]
    %v1530 = vld [vmem:[#allocation10 + $0x1bc] sm:$0xf]
    %v1531 = vld [vmem:[#allocation10 + $0x1c0] sm:$0xf]
    %v1532 = vld [vmem:[#allocation10 + $0x1c4] sm:$0xf]
    %v1533 = vld [vmem:[#allocation10 + $0x1c8] sm:$0xf]
    %v1534 = vld [vmem:[#allocation10 + $0x1cc] sm:$0xf]
    %v1535 = vld [vmem:[#allocation10 + $0x1d0] sm:$0xf]
    %v1536 = vld [vmem:[#allocation10 + $0x1d4] sm:$0xf]
    %v1537 = vld [vmem:[#allocation10 + $0x1d8] sm:$0xf]
    %v1538 = vld [vmem:[#allocation10 + $0x1dc] sm:$0xf]
    %v1539 = vld [vmem:[#allocation10 + $0x1e0] sm:$0xf]
    %v1540 = vld [vmem:[#allocation10 + $0x1e4] sm:$0xf]
    %v1541 = vld [vmem:[#allocation10 + $0x1e8] sm:$0xf]
    %v1542 = vld [vmem:[#allocation10 + $0x1ec] sm:$0xf]
    %v1543 = vld [vmem:[#allocation10 + $0x1f0] sm:$0xf]
    %v1544 = vld [vmem:[#allocation10 + $0x1f4] sm:$0xf]
    %v1545 = vld [vmem:[#allocation10 + $0x1f8] sm:$0xf]
    %v1546 = vld [vmem:[#allocation10 + $0x1fc] sm:$0xf]
    %v1547 = vld [vmem:[#allocation10 + $0x200] sm:$0xf]
    %v1548 = vld [vmem:[#allocation10 + $0x204] sm:$0xf]
    %v1549 = vld [vmem:[#allocation10 + $0x208] sm:$0xf]
    %v1550 = vld [vmem:[#allocation10 + $0x20c] sm:$0xf]
    %v1551 = vld [vmem:[#allocation10 + $0x210] sm:$0xf]
    %v1552 = vld [vmem:[#allocation10 + $0x214] sm:$0xf]
    %v1553 = vld [vmem:[#allocation10 + $0x218] sm:$0xf]
    %v1554 = vld [vmem:[#allocation10 + $0x21c] sm:$0xf]
    %v1555 = vld [vmem:[#allocation10 + $0x220] sm:$0xf]
    %v1556 = vld [vmem:[#allocation10 + $0x224] sm:$0xf]
    %v1557 = vld [vmem:[#allocation10 + $0x228] sm:$0xf]
    %v1558 = vld [vmem:[#allocation10 + $0x22c] sm:$0xf]
    %v1559 = vld [vmem:[#allocation10 + $0x230] sm:$0xf]
    %v1560 = vld [vmem:[#allocation10 + $0x234] sm:$0xf]
    %v1561 = vld [vmem:[#allocation10 + $0x238] sm:$0xf]
    %v1562 = vld [vmem:[#allocation10 + $0x23c] sm:$0xf]
    %v1563 = vld [vmem:[#allocation10 + $0x240] sm:$0xf]
    %v1564 = vld [vmem:[#allocation10 + $0x244] sm:$0xf]
    %v1565 = vld [vmem:[#allocation10 + $0x248] sm:$0xf]
    %v1566 = vld [vmem:[#allocation10 + $0x24c] sm:$0xf]
    %v1567 = vld [vmem:[#allocation10 + $0x250] sm:$0xf]
    %v1568 = vld [vmem:[#allocation10 + $0x254] sm:$0xf]
    %v1569 = vld [vmem:[#allocation10 + $0x258] sm:$0xf]
    %v1570 = vld [vmem:[#allocation10 + $0x25c] sm:$0xf]
    %v1571 = vld [vmem:[#allocation10 + $0x260] sm:$0xf]
    %v1572 = vld [vmem:[#allocation10 + $0x264] sm:$0xf]
    %v1573 = vld [vmem:[#allocation10 + $0x268] sm:$0xf]
    %v1574 = vld [vmem:[#allocation10 + $0x26c] sm:$0xf]
    %v1575 = vld [vmem:[#allocation10 + $0x270] sm:$0xf]
    %v1576 = vld [vmem:[#allocation10 + $0x274] sm:$0xf]
    %v1577 = vld [vmem:[#allocation10 + $0x278] sm:$0xf]
    %v1578 = vld [vmem:[#allocation10 + $0x27c] sm:$0xf]
    %v1579 = vld [vmem:[#allocation10 + $0x280] sm:$0xf]
    %v1580 = vld [vmem:[#allocation10 + $0x284] sm:$0xf]
    %v1581 = vld [vmem:[#allocation10 + $0x288] sm:$0xf]
    %v1582 = vld [vmem:[#allocation10 + $0x28c] sm:$0xf]
    %v1583 = vld [vmem:[#allocation10 + $0x290] sm:$0xf]
    %v1584 = vld [vmem:[#allocation10 + $0x294] sm:$0xf]
    %v1585 = vld [vmem:[#allocation10 + $0x298] sm:$0xf]
    %v1586 = vld [vmem:[#allocation10 + $0x29c] sm:$0xf]
    %v1587 = vld [vmem:[#allocation10 + $0x2a0] sm:$0xf]
    %v1588 = vld [vmem:[#allocation10 + $0x2a4] sm:$0xf]
    %v1589 = vld [vmem:[#allocation10 + $0x2a8] sm:$0xf]
    %v1590 = vld [vmem:[#allocation10 + $0x2ac] sm:$0xf]
    %v1591 = vld [vmem:[#allocation10 + $0x2b0] sm:$0xf]
    %v1592 = vld [vmem:[#allocation10 + $0x2b4] sm:$0xf]
    %v1593 = vld [vmem:[#allocation10 + $0x2b8] sm:$0xf]
    %v1594 = vld [vmem:[#allocation10 + $0x2bc] sm:$0xf]
    %v1595 = vld [vmem:[#allocation10 + $0x2c0] sm:$0xf]
    %v1596 = vld [vmem:[#allocation10 + $0x2c4] sm:$0xf]
    %v1597 = vld [vmem:[#allocation10 + $0x2c8] sm:$0xf]
    %v1598 = vld [vmem:[#allocation10 + $0x2cc] sm:$0xf]
    %v1599 = vld [vmem:[#allocation10 + $0x2d0] sm:$0xf]
    %v1600 = vld [vmem:[#allocation10 + $0x2d4] sm:$0xf]
    %v1601 = vld [vmem:[#allocation10 + $0x2d8] sm:$0xf]
    %v1602 = vld [vmem:[#allocation10 + $0x2dc] sm:$0xf]
    %v1603 = vld [vmem:[#allocation10 + $0x2e0] sm:$0xf]
    %v1604 = vld [vmem:[#allocation10 + $0x2e4] sm:$0xf]
    %v1605 = vld [vmem:[#allocation10 + $0x2e8] sm:$0xf]
    %v1606 = vld [vmem:[#allocation10 + $0x2ec] sm:$0xf]
    %v1607 = vld [vmem:[#allocation10 + $0x2f0] sm:$0xf]
    %v1608 = vld [vmem:[#allocation10 + $0x2f4] sm:$0xf]
    %v1609 = vld [vmem:[#allocation10 + $0x2f8] sm:$0xf]
    %v1610 = vld [vmem:[#allocation10 + $0x2fc] sm:$0xf]
    %v1611 = vld [vmem:[#allocation10 + $0x300] sm:$0xf]
    %v1612 = vld [vmem:[#allocation10 + $0x304] sm:$0xf]
    %v1613 = vld [vmem:[#allocation10 + $0x308] sm:$0xf]
    %v1614 = vld [vmem:[#allocation10 + $0x30c] sm:$0xf]
    %v1615 = vld [vmem:[#allocation10 + $0x310] sm:$0xf]
    %v1616 = vld [vmem:[#allocation10 + $0x314] sm:$0xf]
    %v1617 = vld [vmem:[#allocation10 + $0x318] sm:$0xf]
    %v1618 = vld [vmem:[#allocation10 + $0x31c] sm:$0xf]
    %v1619 = vld [vmem:[#allocation10 + $0x320] sm:$0xf]
    %v1620 = vld [vmem:[#allocation10 + $0x324] sm:$0xf]
    %v1621 = vld [vmem:[#allocation10 + $0x328] sm:$0xf]
    %v1622 = vld [vmem:[#allocation10 + $0x32c] sm:$0xf]
    %v1623 = vld [vmem:[#allocation10 + $0x330] sm:$0xf]
    %v1624 = vld [vmem:[#allocation10 + $0x334] sm:$0xf]
    %v1625 = vld [vmem:[#allocation10 + $0x338] sm:$0xf]
    %v1626 = vld [vmem:[#allocation10 + $0x33c] sm:$0xf]
    %v1627 = vld [vmem:[#allocation10 + $0x340] sm:$0xf]
    %v1628 = vld [vmem:[#allocation10 + $0x344] sm:$0xf]
    %v1629 = vld [vmem:[#allocation10 + $0x348] sm:$0xf]
    %v1630 = vld [vmem:[#allocation10 + $0x34c] sm:$0xf]
    %v1631 = vld [vmem:[#allocation10 + $0x350] sm:$0xf]
    %v1632 = vld [vmem:[#allocation10 + $0x354] sm:$0xf]
    %v1633 = vld [vmem:[#allocation10 + $0x358] sm:$0xf]
    %v1634 = vld [vmem:[#allocation10 + $0x35c] sm:$0xf]
    %v1635 = vld [vmem:[#allocation10 + $0x360] sm:$0xf]
    %v1636 = vld [vmem:[#allocation10 + $0x364] sm:$0xf]
    %v1637 = vld [vmem:[#allocation10 + $0x368] sm:$0xf]
    %v1638 = vld [vmem:[#allocation10 + $0x36c] sm:$0xf]
    %v1639 = vld [vmem:[#allocation10 + $0x370] sm:$0xf]
    %v1640 = vld [vmem:[#allocation10 + $0x374] sm:$0xf]
    %v1641 = vld [vmem:[#allocation10 + $0x378] sm:$0xf]
    %v1642 = vld [vmem:[#allocation10 + $0x37c] sm:$0xf]
    %v1643 = vld [vmem:[#allocation10 + $0x380] sm:$0xf]
    %v1644 = vld [vmem:[#allocation10 + $0x384] sm:$0xf]
    %v1645 = vld [vmem:[#allocation10 + $0x388] sm:$0xf]
    %v1646 = vld [vmem:[#allocation10 + $0x38c] sm:$0xf]
    %v1647 = vld [vmem:[#allocation10 + $0x390] sm:$0xf]
    %v1648 = vld [vmem:[#allocation10 + $0x394] sm:$0xf]
    %v1649 = vld [vmem:[#allocation10 + $0x398] sm:$0xf]
    %v1650 = vld [vmem:[#allocation10 + $0x39c] sm:$0xf]
    %v1651 = vld [vmem:[#allocation10 + $0x3a0] sm:$0xf]
    %v1652 = vld [vmem:[#allocation10 + $0x3a4] sm:$0xf]
    %v1653 = vld [vmem:[#allocation10 + $0x3a8] sm:$0xf]
    %v1654 = vld [vmem:[#allocation10 + $0x3ac] sm:$0xf]
    %v1655 = vld [vmem:[#allocation10 + $0x3b0] sm:$0xf]
    %v1656 = vld [vmem:[#allocation10 + $0x3b4] sm:$0xf]
    %v1657 = vld [vmem:[#allocation10 + $0x3b8] sm:$0xf]
    %v1658 = vld [vmem:[#allocation10 + $0x3bc] sm:$0xf]
    %v1659 = vld [vmem:[#allocation10 + $0x3c0] sm:$0xf]
    %v1660 = vld [vmem:[#allocation10 + $0x3c4] sm:$0xf]
    %v1661 = vld [vmem:[#allocation10 + $0x3c8] sm:$0xf]
    %v1662 = vld [vmem:[#allocation10 + $0x3cc] sm:$0xf]
    %v1663 = vld [vmem:[#allocation10 + $0x3d0] sm:$0xf]
    %v1664 = vld [vmem:[#allocation10 + $0x3d4] sm:$0xf]
    %v1665 = vld [vmem:[#allocation10 + $0x3d8] sm:$0xf]
    %v1666 = vld [vmem:[#allocation10 + $0x3dc] sm:$0xf]
    %v1667 = vld [vmem:[#allocation10 + $0x3e0] sm:$0xf]
    %v1668 = vld [vmem:[#allocation10 + $0x3e4] sm:$0xf]
    %v1669 = vld [vmem:[#allocation10 + $0x3e8] sm:$0xf]
    %v1670 = vld [vmem:[#allocation10 + $0x3ec] sm:$0xf]
    %v1671 = vld [vmem:[#allocation10 + $0x3f0] sm:$0xf]
    %v1672 = vld [vmem:[#allocation10 + $0x3f4] sm:$0xf]
    %v1673 = vld [vmem:[#allocation10 + $0x3f8] sm:$0xf]
    %v1674 = vld [vmem:[#allocation10 + $0x3fc] sm:$0xf]
    %v1675 = vld [vmem:[%s6] sm:$0x1]
    %v1677 = vlaneseq
    %v1678 = vshrl.u32 %v1677, 7
    %v1679 = vsub.s32 0, %v1678
    %v1680 = vrot.slane %v1675, %v1679
    %v1938 = vunpack.c.l.b16 %v1419
    %v1939 = vunpack.c.l.b16 %v1420
    %v1940 = vunpack.c.l.b16 %v1421
    %v1941 = vunpack.c.l.b16 %v1422
    %v1942 = vunpack.c.l.b16 %v1423
    %v1943 = vunpack.c.l.b16 %v1424
    %v1944 = vunpack.c.l.b16 %v1425
    %v1945 = vunpack.c.l.b16 %v1426
    %v1946 = vunpack.c.l.b16 %v1427
    %v1947 = vunpack.c.l.b16 %v1428
    %v1948 = vunpack.c.l.b16 %v1429
    %v1949 = vunpack.c.l.b16 %v1430
    %v1950 = vunpack.c.l.b16 %v1431
    %v1951 = vunpack.c.l.b16 %v1432
    %v1952 = vunpack.c.l.b16 %v1433
    %v1953 = vunpack.c.l.b16 %v1434
    %v1954 = vunpack.c.l.b16 %v1435
    %v1955 = vunpack.c.l.b16 %v1436
    %v1956 = vunpack.c.l.b16 %v1437
    %v1957 = vunpack.c.l.b16 %v1438
    %v1958 = vunpack.c.l.b16 %v1439
    %v1959 = vunpack.c.l.b16 %v1440
    %v1960 = vunpack.c.l.b16 %v1441
    %v1961 = vunpack.c.l.b16 %v1442
    %v1962 = vunpack.c.l.b16 %v1443
    %v1963 = vunpack.c.l.b16 %v1444
    %v1964 = vunpack.c.l.b16 %v1445
    %v1965 = vunpack.c.l.b16 %v1446
    %v1966 = vunpack.c.l.b16 %v1447
    %v1967 = vunpack.c.l.b16 %v1448
    %v1968 = vunpack.c.l.b16 %v1449
    %v1969 = vunpack.c.l.b16 %v1450
    %v1970 = vunpack.c.l.b16 %v1451
    %v1971 = vunpack.c.l.b16 %v1452
    %v1972 = vunpack.c.l.b16 %v1453
    %v1973 = vunpack.c.l.b16 %v1454
    %v1974 = vunpack.c.l.b16 %v1455
    %v1975 = vunpack.c.l.b16 %v1456
    %v1976 = vunpack.c.l.b16 %v1457
    %v1977 = vunpack.c.l.b16 %v1458
    %v1978 = vunpack.c.l.b16 %v1459
    %v1979 = vunpack.c.l.b16 %v1460
    %v1980 = vunpack.c.l.b16 %v1461
    %v1981 = vunpack.c.l.b16 %v1462
    %v1982 = vunpack.c.l.b16 %v1463
    %v1983 = vunpack.c.l.b16 %v1464
    %v1984 = vunpack.c.l.b16 %v1465
    %v1985 = vunpack.c.l.b16 %v1466
    %v1986 = vunpack.c.l.b16 %v1467
    %v1987 = vunpack.c.l.b16 %v1468
    %v1988 = vunpack.c.l.b16 %v1469
    %v1989 = vunpack.c.l.b16 %v1470
    %v1990 = vunpack.c.l.b16 %v1471
    %v1991 = vunpack.c.l.b16 %v1472
    %v1992 = vunpack.c.l.b16 %v1473
    %v1993 = vunpack.c.l.b16 %v1474
    %v1994 = vunpack.c.l.b16 %v1475
    %v1995 = vunpack.c.l.b16 %v1476
    %v1996 = vunpack.c.l.b16 %v1477
    %v1997 = vunpack.c.l.b16 %v1478
    %v1998 = vunpack.c.l.b16 %v1479
    %v1999 = vunpack.c.l.b16 %v1480
    %v2000 = vunpack.c.l.b16 %v1481
    %v2001 = vunpack.c.l.b16 %v1482
    %v2002 = vunpack.c.l.b16 %v1483
    %v2003 = vunpack.c.l.b16 %v1484
    %v2004 = vunpack.c.l.b16 %v1485
    %v2005 = vunpack.c.l.b16 %v1486
    %v2006 = vunpack.c.l.b16 %v1487
    %v2007 = vunpack.c.l.b16 %v1488
    %v2008 = vunpack.c.l.b16 %v1489
    %v2009 = vunpack.c.l.b16 %v1490
    %v2010 = vunpack.c.l.b16 %v1491
    %v2011 = vunpack.c.l.b16 %v1492
    %v2012 = vunpack.c.l.b16 %v1493
    %v2013 = vunpack.c.l.b16 %v1494
    %v2014 = vunpack.c.l.b16 %v1495
    %v2015 = vunpack.c.l.b16 %v1496
    %v2016 = vunpack.c.l.b16 %v1497
    %v2017 = vunpack.c.l.b16 %v1498
    %v2018 = vunpack.c.l.b16 %v1499
    %v2019 = vunpack.c.l.b16 %v1500
    %v2020 = vunpack.c.l.b16 %v1501
    %v2021 = vunpack.c.l.b16 %v1502
    %v2022 = vunpack.c.l.b16 %v1503
    %v2023 = vunpack.c.l.b16 %v1504
    %v2024 = vunpack.c.l.b16 %v1505
    %v2025 = vunpack.c.l.b16 %v1506
    %v2026 = vunpack.c.l.b16 %v1507
    %v2027 = vunpack.c.l.b16 %v1508
    %v2028 = vunpack.c.l.b16 %v1509
    %v2029 = vunpack.c.l.b16 %v1510
    %v2030 = vunpack.c.l.b16 %v1511
    %v2031 = vunpack.c.l.b16 %v1512
    %v2032 = vunpack.c.l.b16 %v1513
    %v2033 = vunpack.c.l.b16 %v1514
    %v2034 = vunpack.c.l.b16 %v1515
    %v2035 = vunpack.c.l.b16 %v1516
    %v2036 = vunpack.c.l.b16 %v1517
    %v2037 = vunpack.c.l.b16 %v1518
    %v2038 = vunpack.c.l.b16 %v1519
    %v2039 = vunpack.c.l.b16 %v1520
    %v2040 = vunpack.c.l.b16 %v1521
    %v2041 = vunpack.c.l.b16 %v1522
    %v2042 = vunpack.c.l.b16 %v1523
    %v2043 = vunpack.c.l.b16 %v1524
    %v2044 = vunpack.c.l.b16 %v1525
    %v2045 = vunpack.c.l.b16 %v1526
    %v2046 = vunpack.c.l.b16 %v1527
    %v2047 = vunpack.c.l.b16 %v1528
    %v2048 = vunpack.c.l.b16 %v1529
    %v2049 = vunpack.c.l.b16 %v1530
    %v2050 = vunpack.c.l.b16 %v1531
    %v2051 = vunpack.c.l.b16 %v1532
    %v2052 = vunpack.c.l.b16 %v1533
    %v2053 = vunpack.c.l.b16 %v1534
    %v2054 = vunpack.c.l.b16 %v1535
    %v2055 = vunpack.c.l.b16 %v1536
    %v2056 = vunpack.c.l.b16 %v1537
    %v2057 = vunpack.c.l.b16 %v1538
    %v2058 = vunpack.c.l.b16 %v1539
    %v2059 = vunpack.c.l.b16 %v1540
    %v2060 = vunpack.c.l.b16 %v1541
    %v2061 = vunpack.c.l.b16 %v1542
    %v2062 = vunpack.c.l.b16 %v1543
    %v2063 = vunpack.c.l.b16 %v1544
    %v2064 = vunpack.c.l.b16 %v1545
    %v2065 = vunpack.c.l.b16 %v1546
    %v2066 = vunpack.c.l.b16 %v1547
    %v2067 = vunpack.c.l.b16 %v1548
    %v2068 = vunpack.c.l.b16 %v1549
    %v2069 = vunpack.c.l.b16 %v1550
    %v2070 = vunpack.c.l.b16 %v1551
    %v2071 = vunpack.c.l.b16 %v1552
    %v2072 = vunpack.c.l.b16 %v1553
    %v2073 = vunpack.c.l.b16 %v1554
    %v2074 = vunpack.c.l.b16 %v1555
    %v2075 = vunpack.c.l.b16 %v1556
    %v2076 = vunpack.c.l.b16 %v1557
    %v2077 = vunpack.c.l.b16 %v1558
    %v2078 = vunpack.c.l.b16 %v1559
    %v2079 = vunpack.c.l.b16 %v1560
    %v2080 = vunpack.c.l.b16 %v1561
    %v2081 = vunpack.c.l.b16 %v1562
    %v2082 = vunpack.c.l.b16 %v1563
    %v2083 = vunpack.c.l.b16 %v1564
    %v2084 = vunpack.c.l.b16 %v1565
    %v2085 = vunpack.c.l.b16 %v1566
    %v2086 = vunpack.c.l.b16 %v1567
    %v2087 = vunpack.c.l.b16 %v1568
    %v2088 = vunpack.c.l.b16 %v1569
    %v2089 = vunpack.c.l.b16 %v1570
    %v2090 = vunpack.c.l.b16 %v1571
    %v2091 = vunpack.c.l.b16 %v1572
    %v2092 = vunpack.c.l.b16 %v1573
    %v2093 = vunpack.c.l.b16 %v1574
    %v2094 = vunpack.c.l.b16 %v1575
    %v2095 = vunpack.c.l.b16 %v1576
    %v2096 = vunpack.c.l.b16 %v1577
    %v2097 = vunpack.c.l.b16 %v1578
    %v2098 = vunpack.c.l.b16 %v1579
    %v2099 = vunpack.c.l.b16 %v1580
    %v2100 = vunpack.c.l.b16 %v1581
    %v2101 = vunpack.c.l.b16 %v1582
    %v2102 = vunpack.c.l.b16 %v1583
    %v2103 = vunpack.c.l.b16 %v1584
    %v2104 = vunpack.c.l.b16 %v1585
    %v2105 = vunpack.c.l.b16 %v1586
    %v2106 = vunpack.c.l.b16 %v1587
    %v2107 = vunpack.c.l.b16 %v1588
    %v2108 = vunpack.c.l.b16 %v1589
    %v2109 = vunpack.c.l.b16 %v1590
    %v2110 = vunpack.c.l.b16 %v1591
    %v2111 = vunpack.c.l.b16 %v1592
    %v2112 = vunpack.c.l.b16 %v1593
    %v2113 = vunpack.c.l.b16 %v1594
    %v2114 = vunpack.c.l.b16 %v1595
    %v2115 = vunpack.c.l.b16 %v1596
    %v2116 = vunpack.c.l.b16 %v1597
    %v2117 = vunpack.c.l.b16 %v1598
    %v2118 = vunpack.c.l.b16 %v1599
    %v2119 = vunpack.c.l.b16 %v1600
    %v2120 = vunpack.c.l.b16 %v1601
    %v2121 = vunpack.c.l.b16 %v1602
    %v2122 = vunpack.c.l.b16 %v1603
    %v2123 = vunpack.c.l.b16 %v1604
    %v2124 = vunpack.c.l.b16 %v1605
    %v2125 = vunpack.c.l.b16 %v1606
    %v2126 = vunpack.c.l.b16 %v1607
    %v2127 = vunpack.c.l.b16 %v1608
    %v2128 = vunpack.c.l.b16 %v1609
    %v2129 = vunpack.c.l.b16 %v1610
    %v2130 = vunpack.c.l.b16 %v1611
    %v2131 = vunpack.c.l.b16 %v1612
    %v2132 = vunpack.c.l.b16 %v1613
    %v2133 = vunpack.c.l.b16 %v1614
    %v2134 = vunpack.c.l.b16 %v1615
    %v2135 = vunpack.c.l.b16 %v1616
    %v2136 = vunpack.c.l.b16 %v1617
    %v2137 = vunpack.c.l.b16 %v1618
    %v2138 = vunpack.c.l.b16 %v1619
    %v2139 = vunpack.c.l.b16 %v1620
    %v2140 = vunpack.c.l.b16 %v1621
    %v2141 = vunpack.c.l.b16 %v1622
    %v2142 = vunpack.c.l.b16 %v1623
    %v2143 = vunpack.c.l.b16 %v1624
    %v2144 = vunpack.c.l.b16 %v1625
    %v2145 = vunpack.c.l.b16 %v1626
    %v2146 = vunpack.c.l.b16 %v1627
    %v2147 = vunpack.c.l.b16 %v1628
    %v2148 = vunpack.c.l.b16 %v1629
    %v2149 = vunpack.c.l.b16 %v1630
    %v2150 = vunpack.c.l.b16 %v1631
    %v2151 = vunpack.c.l.b16 %v1632
    %v2152 = vunpack.c.l.b16 %v1633
    %v2153 = vunpack.c.l.b16 %v1634
    %v2154 = vunpack.c.l.b16 %v1635
    %v2155 = vunpack.c.l.b16 %v1636
    %v2156 = vunpack.c.l.b16 %v1637
    %v2157 = vunpack.c.l.b16 %v1638
    %v2158 = vunpack.c.l.b16 %v1639
    %v2159 = vunpack.c.l.b16 %v1640
    %v2160 = vunpack.c.l.b16 %v1641
    %v2161 = vunpack.c.l.b16 %v1642
    %v2162 = vunpack.c.l.b16 %v1643
    %v2163 = vunpack.c.l.b16 %v1644
    %v2164 = vunpack.c.l.b16 %v1645
    %v2165 = vunpack.c.l.b16 %v1646
    %v2166 = vunpack.c.l.b16 %v1647
    %v2167 = vunpack.c.l.b16 %v1648
    %v2168 = vunpack.c.l.b16 %v1649
    %v2169 = vunpack.c.l.b16 %v1650
    %v2170 = vunpack.c.l.b16 %v1651
    %v2171 = vunpack.c.l.b16 %v1652
    %v2172 = vunpack.c.l.b16 %v1653
    %v2173 = vunpack.c.l.b16 %v1654
    %v2174 = vunpack.c.l.b16 %v1655
    %v2175 = vunpack.c.l.b16 %v1656
    %v2176 = vunpack.c.l.b16 %v1657
    %v2177 = vunpack.c.l.b16 %v1658
    %v2178 = vunpack.c.l.b16 %v1659
    %v2179 = vunpack.c.l.b16 %v1660
    %v2180 = vunpack.c.l.b16 %v1661
    %v2181 = vunpack.c.l.b16 %v1662
    %v2182 = vunpack.c.l.b16 %v1663
    %v2183 = vunpack.c.l.b16 %v1664
    %v2184 = vunpack.c.l.b16 %v1665
    %v2185 = vunpack.c.l.b16 %v1666
    %v2186 = vunpack.c.l.b16 %v1667
    %v2187 = vunpack.c.l.b16 %v1668
    %v2188 = vunpack.c.l.b16 %v1669
    %v2189 = vunpack.c.l.b16 %v1670
    %v2190 = vunpack.c.l.b16 %v1671
    %v2191 = vunpack.c.l.b16 %v1672
    %v2192 = vunpack.c.l.b16 %v1673
    %v2193 = vunpack.c.l.b16 %v1674
    %v2194 = vpack.c.b16 %v1939, %v1938
    %v2195 = vpack.c.b16 %v1941, %v1940
    %v2196 = vpack.c.b16 %v1943, %v1942
    %v2197 = vpack.c.b16 %v1945, %v1944
    %v2198 = vpack.c.b16 %v1947, %v1946
    %v2199 = vpack.c.b16 %v1949, %v1948
    %v2200 = vpack.c.b16 %v1951, %v1950
    %v2201 = vpack.c.b16 %v1953, %v1952
    %v2202 = vpack.c.b16 %v1955, %v1954
    %v2203 = vpack.c.b16 %v1957, %v1956
    %v2204 = vpack.c.b16 %v1959, %v1958
    %v2205 = vpack.c.b16 %v1961, %v1960
    %v2206 = vpack.c.b16 %v1963, %v1962
    %v2207 = vpack.c.b16 %v1965, %v1964
    %v2208 = vpack.c.b16 %v1967, %v1966
    %v2209 = vpack.c.b16 %v1969, %v1968
    %v2210 = vpack.c.b16 %v1971, %v1970
    %v2211 = vpack.c.b16 %v1973, %v1972
    %v2212 = vpack.c.b16 %v1975, %v1974
    %v2213 = vpack.c.b16 %v1977, %v1976
    %v2214 = vpack.c.b16 %v1979, %v1978
    %v2215 = vpack.c.b16 %v1981, %v1980
    %v2216 = vpack.c.b16 %v1983, %v1982
    %v2217 = vpack.c.b16 %v1985, %v1984
    %v2218 = vpack.c.b16 %v1987, %v1986
    %v2219 = vpack.c.b16 %v1989, %v1988
    %v2220 = vpack.c.b16 %v1991, %v1990
    %v2221 = vpack.c.b16 %v1993, %v1992
    %v2222 = vpack.c.b16 %v1995, %v1994
    %v2223 = vpack.c.b16 %v1997, %v1996
    %v2224 = vpack.c.b16 %v1999, %v1998
    %v2225 = vpack.c.b16 %v2001, %v2000
    %v2226 = vpack.c.b16 %v2003, %v2002
    %v2227 = vpack.c.b16 %v2005, %v2004
    %v2228 = vpack.c.b16 %v2007, %v2006
    %v2229 = vpack.c.b16 %v2009, %v2008
    %v2230 = vpack.c.b16 %v2011, %v2010
    %v2231 = vpack.c.b16 %v2013, %v2012
    %v2232 = vpack.c.b16 %v2015, %v2014
    %v2233 = vpack.c.b16 %v2017, %v2016
    %v2234 = vpack.c.b16 %v2019, %v2018
    %v2235 = vpack.c.b16 %v2021, %v2020
    %v2236 = vpack.c.b16 %v2023, %v2022
    %v2237 = vpack.c.b16 %v2025, %v2024
    %v2238 = vpack.c.b16 %v2027, %v2026
    %v2239 = vpack.c.b16 %v2029, %v2028
    %v2240 = vpack.c.b16 %v2031, %v2030
    %v2241 = vpack.c.b16 %v2033, %v2032
    %v2242 = vpack.c.b16 %v2035, %v2034
    %v2243 = vpack.c.b16 %v2037, %v2036
    %v2244 = vpack.c.b16 %v2039, %v2038
    %v2245 = vpack.c.b16 %v2041, %v2040
    %v2246 = vpack.c.b16 %v2043, %v2042
    %v2247 = vpack.c.b16 %v2045, %v2044
    %v2248 = vpack.c.b16 %v2047, %v2046
    %v2249 = vpack.c.b16 %v2049, %v2048
    %v2250 = vpack.c.b16 %v2051, %v2050
    %v2251 = vpack.c.b16 %v2053, %v2052
    %v2252 = vpack.c.b16 %v2055, %v2054
    %v2253 = vpack.c.b16 %v2057, %v2056
    %v2254 = vpack.c.b16 %v2059, %v2058
    %v2255 = vpack.c.b16 %v2061, %v2060
    %v2256 = vpack.c.b16 %v2063, %v2062
    %v2257 = vpack.c.b16 %v2065, %v2064
    %v2258 = vpack.c.b16 %v2067, %v2066
    %v2259 = vpack.c.b16 %v2069, %v2068
    %v2260 = vpack.c.b16 %v2071, %v2070
    %v2261 = vpack.c.b16 %v2073, %v2072
    %v2262 = vpack.c.b16 %v2075, %v2074
    %v2263 = vpack.c.b16 %v2077, %v2076
    %v2264 = vpack.c.b16 %v2079, %v2078
    %v2265 = vpack.c.b16 %v2081, %v2080
    %v2266 = vpack.c.b16 %v2083, %v2082
    %v2267 = vpack.c.b16 %v2085, %v2084
    %v2268 = vpack.c.b16 %v2087, %v2086
    %v2269 = vpack.c.b16 %v2089, %v2088
    %v2270 = vpack.c.b16 %v2091, %v2090
    %v2271 = vpack.c.b16 %v2093, %v2092
    %v2272 = vpack.c.b16 %v2095, %v2094
    %v2273 = vpack.c.b16 %v2097, %v2096
    %v2274 = vpack.c.b16 %v2099, %v2098
    %v2275 = vpack.c.b16 %v2101, %v2100
    %v2276 = vpack.c.b16 %v2103, %v2102
    %v2277 = vpack.c.b16 %v2105, %v2104
    %v2278 = vpack.c.b16 %v2107, %v2106
    %v2279 = vpack.c.b16 %v2109, %v2108
    %v2280 = vpack.c.b16 %v2111, %v2110
    %v2281 = vpack.c.b16 %v2113, %v2112
    %v2282 = vpack.c.b16 %v2115, %v2114
    %v2283 = vpack.c.b16 %v2117, %v2116
    %v2284 = vpack.c.b16 %v2119, %v2118
    %v2285 = vpack.c.b16 %v2121, %v2120
    %v2286 = vpack.c.b16 %v2123, %v2122
    %v2287 = vpack.c.b16 %v2125, %v2124
    %v2288 = vpack.c.b16 %v2127, %v2126
    %v2289 = vpack.c.b16 %v2129, %v2128
    %v2290 = vpack.c.b16 %v2131, %v2130
    %v2291 = vpack.c.b16 %v2133, %v2132
    %v2292 = vpack.c.b16 %v2135, %v2134
    %v2293 = vpack.c.b16 %v2137, %v2136
    %v2294 = vpack.c.b16 %v2139, %v2138
    %v2295 = vpack.c.b16 %v2141, %v2140
    %v2296 = vpack.c.b16 %v2143, %v2142
    %v2297 = vpack.c.b16 %v2145, %v2144
    %v2298 = vpack.c.b16 %v2147, %v2146
    %v2299 = vpack.c.b16 %v2149, %v2148
    %v2300 = vpack.c.b16 %v2151, %v2150
    %v2301 = vpack.c.b16 %v2153, %v2152
    %v2302 = vpack.c.b16 %v2155, %v2154
    %v2303 = vpack.c.b16 %v2157, %v2156
    %v2304 = vpack.c.b16 %v2159, %v2158
    %v2305 = vpack.c.b16 %v2161, %v2160
    %v2306 = vpack.c.b16 %v2163, %v2162
    %v2307 = vpack.c.b16 %v2165, %v2164
    %v2308 = vpack.c.b16 %v2167, %v2166
    %v2309 = vpack.c.b16 %v2169, %v2168
    %v2310 = vpack.c.b16 %v2171, %v2170
    %v2311 = vpack.c.b16 %v2173, %v2172
    %v2312 = vpack.c.b16 %v2175, %v2174
    %v2313 = vpack.c.b16 %v2177, %v2176
    %v2314 = vpack.c.b16 %v2179, %v2178
    %v2315 = vpack.c.b16 %v2181, %v2180
    %v2316 = vpack.c.b16 %v2183, %v2182
    %v2317 = vpack.c.b16 %v2185, %v2184
    %v2318 = vpack.c.b16 %v2187, %v2186
    %v2319 = vpack.c.b16 %v2189, %v2188
    %v2320 = vpack.c.b16 %v2191, %v2190
    %v2321 = vpack.c.b16 %v2193, %v2192
    %2450 = vmatprep.subr.bf16.mxu0 0
    %2451 = vmatpush1.bf16.msra.mxu0 %v2194
    %2452 = vmatprep.subr.bf16.mxu0 0
    %2453 = vmatpush1.bf16.msra.mxu0 %v2195
    %2454 = vmatprep.subr.bf16.mxu0 0
    %2455 = vmatpush1.bf16.msra.mxu0 %v2196
    %2456 = vmatprep.subr.bf16.mxu0 0
    %2457 = vmatpush1.bf16.msra.mxu0 %v2197
    %2458 = vmatprep.subr.bf16.mxu0 0
    %2459 = vmatpush1.bf16.msra.mxu0 %v2198
    %2460 = vmatprep.subr.bf16.mxu0 0
    %2461 = vmatpush1.bf16.msra.mxu0 %v2199
    %2462 = vmatprep.subr.bf16.mxu0 0
    %2463 = vmatpush1.bf16.msra.mxu0 %v2200
    %2464 = vmatprep.subr.bf16.mxu0 0
    %2465 = vmatpush1.bf16.msra.mxu0 %v2201
    %2466 = vmatprep.subr.bf16.mxu0 0
    %2467 = vmatpush1.bf16.msra.mxu0 %v2202
    %2468 = vmatprep.subr.bf16.mxu0 0
    %2469 = vmatpush1.bf16.msra.mxu0 %v2203
    %2470 = vmatprep.subr.bf16.mxu0 0
    %2471 = vmatpush1.bf16.msra.mxu0 %v2204
    %2472 = vmatprep.subr.bf16.mxu0 0
    %2473 = vmatpush1.bf16.msra.mxu0 %v2205
    %2474 = vmatprep.subr.bf16.mxu0 0
    %2475 = vmatpush1.bf16.msra.mxu0 %v2206
    %2476 = vmatprep.subr.bf16.mxu0 0
    %2477 = vmatpush1.bf16.msra.mxu0 %v2207
    %2478 = vmatprep.subr.bf16.mxu0 0
    %2479 = vmatpush1.bf16.msra.mxu0 %v2208
    %2480 = vmatprep.subr.bf16.mxu0 0
    %2481 = vmatpush1.bf16.msra.mxu0 %v2209
    %2482 = vmatprep.mubr.bf16.mxu0 %v1404
    %2483 = vmatmul.mubr.bf16.gmra.mrb[0].mxu0 %v1403
    %v2484 = vpop.f32.mrb[0].mxu0
    %v2485 = vadd.f32 %v1680, %v2484
    %v2486 = vpop.f32.mrb[0].mxu0
    %v2487 = vpop.f32.mrb[0].mxu0
    %v2488 = vpop.f32.mrb[0].mxu0
    %2489 = vdwg.mxu0
    %2490 = vmatprep.subr.bf16.mxu0 0
    %2491 = vmatpush1.bf16.msra.mxu0 %v2210
    %2492 = vmatprep.subr.bf16.mxu0 0
    %2493 = vmatpush1.bf16.msra.mxu0 %v2211
    %2494 = vmatprep.subr.bf16.mxu0 0
    %2495 = vmatpush1.bf16.msra.mxu0 %v2212
    %2496 = vmatprep.subr.bf16.mxu0 0
    %2497 = vmatpush1.bf16.msra.mxu0 %v2213
    %2498 = vmatprep.subr.bf16.mxu0 0
    %2499 = vmatpush1.bf16.msra.mxu0 %v2214
    %2500 = vmatprep.subr.bf16.mxu0 0
    %2501 = vmatpush1.bf16.msra.mxu0 %v2215
    %2502 = vmatprep.subr.bf16.mxu0 0
    %2503 = vmatpush1.bf16.msra.mxu0 %v2216
    %2504 = vmatprep.subr.bf16.mxu0 0
    %2505 = vmatpush1.bf16.msra.mxu0 %v2217
    %2506 = vmatprep.subr.bf16.mxu0 0
    %2507 = vmatpush1.bf16.msra.mxu0 %v2218
    %2508 = vmatprep.subr.bf16.mxu0 0
    %2509 = vmatpush1.bf16.msra.mxu0 %v2219
    %2510 = vmatprep.subr.bf16.mxu0 0
    %2511 = vmatpush1.bf16.msra.mxu0 %v2220
    %2512 = vmatprep.subr.bf16.mxu0 0
    %2513 = vmatpush1.bf16.msra.mxu0 %v2221
    %2514 = vmatprep.subr.bf16.mxu0 0
    %2515 = vmatpush1.bf16.msra.mxu0 %v2222
    %2516 = vmatprep.subr.bf16.mxu0 0
    %2517 = vmatpush1.bf16.msra.mxu0 %v2223
    %2518 = vmatprep.subr.bf16.mxu0 0
    %2519 = vmatpush1.bf16.msra.mxu0 %v2224
    %2520 = vmatprep.subr.bf16.mxu0 0
    %2521 = vmatpush1.bf16.msra.mxu0 %v2225
    %2522 = vmatprep.mubr.bf16.mxu0 %v1406
    %2523 = vmatmul.mubr.bf16.gmra.mrb[0].mxu0 %v1405
    %v2524 = vpop.f32.mrb[0].mxu0
    %v2525 = vadd.f32 %v2485, %v2524
    %v2526 = vpop.f32.mrb[0].mxu0
    %v2527 = vpop.f32.mrb[0].mxu0
    %v2528 = vpop.f32.mrb[0].mxu0
    %2529 = vdwg.mxu0
    %2530 = vmatprep.subr.bf16.mxu0 0
    %2531 = vmatpush1.bf16.msra.mxu0 %v2226
    %2532 = vmatprep.subr.bf16.mxu0 0
    %2533 = vmatpush1.bf16.msra.mxu0 %v2227
    %2534 = vmatprep.subr.bf16.mxu0 0
    %2535 = vmatpush1.bf16.msra.mxu0 %v2228
    %2536 = vmatprep.subr.bf16.mxu0 0
    %2537 = vmatpush1.bf16.msra.mxu0 %v2229
    %2538 = vmatprep.subr.bf16.mxu0 0
    %2539 = vmatpush1.bf16.msra.mxu0 %v2230
    %2540 = vmatprep.subr.bf16.mxu0 0
    %2541 = vmatpush1.bf16.msra.mxu0 %v2231
    %2542 = vmatprep.subr.bf16.mxu0 0
    %2543 = vmatpush1.bf16.msra.mxu0 %v2232
    %2544 = vmatprep.subr.bf16.mxu0 0
    %2545 = vmatpush1.bf16.msra.mxu0 %v2233
    %2546 = vmatprep.subr.bf16.mxu0 0
    %2547 = vmatpush1.bf16.msra.mxu0 %v2234
    %2548 = vmatprep.subr.bf16.mxu0 0
    %2549 = vmatpush1.bf16.msra.mxu0 %v2235
    %2550 = vmatprep.subr.bf16.mxu0 0
    %2551 = vmatpush1.bf16.msra.mxu0 %v2236
    %2552 = vmatprep.subr.bf16.mxu0 0
    %2553 = vmatpush1.bf16.msra.mxu0 %v2237
    %2554 = vmatprep.subr.bf16.mxu0 0
    %2555 = vmatpush1.bf16.msra.mxu0 %v2238
    %2556 = vmatprep.subr.bf16.mxu0 0
    %2557 = vmatpush1.bf16.msra.mxu0 %v2239
    %2558 = vmatprep.subr.bf16.mxu0 0
    %2559 = vmatpush1.bf16.msra.mxu0 %v2240
    %2560 = vmatprep.subr.bf16.mxu0 0
    %2561 = vmatpush1.bf16.msra.mxu0 %v2241
    %2562 = vmatprep.mubr.bf16.mxu0 %v1408
    %2563 = vmatmul.mubr.bf16.gmra.mrb[0].mxu0 %v1407
    %v2564 = vpop.f32.mrb[0].mxu0
    %v2565 = vadd.f32 %v2525, %v2564
    %v2566 = vpop.f32.mrb[0].mxu0
    %v2567 = vpop.f32.mrb[0].mxu0
    %v2568 = vpop.f32.mrb[0].mxu0
    %2569 = vdwg.mxu0
    %2570 = vmatprep.subr.bf16.mxu0 0
    %2571 = vmatpush1.bf16.msra.mxu0 %v2242
    %2572 = vmatprep.subr.bf16.mxu0 0
    %2573 = vmatpush1.bf16.msra.mxu0 %v2243
    %2574 = vmatprep.subr.bf16.mxu0 0
    %2575 = vmatpush1.bf16.msra.mxu0 %v2244
    %2576 = vmatprep.subr.bf16.mxu0 0
    %2577 = vmatpush1.bf16.msra.mxu0 %v2245
    %2578 = vmatprep.subr.bf16.mxu0 0
    %2579 = vmatpush1.bf16.msra.mxu0 %v2246
    %2580 = vmatprep.subr.bf16.mxu0 0
    %2581 = vmatpush1.bf16.msra.mxu0 %v2247
    %2582 = vmatprep.subr.bf16.mxu0 0
    %2583 = vmatpush1.bf16.msra.mxu0 %v2248
    %2584 = vmatprep.subr.bf16.mxu0 0
    %2585 = vmatpush1.bf16.msra.mxu0 %v2249
    %2586 = vmatprep.subr.bf16.mxu0 0
    %2587 = vmatpush1.bf16.msra.mxu0 %v2250
    %2588 = vmatprep.subr.bf16.mxu0 0
    %2589 = vmatpush1.bf16.msra.mxu0 %v2251
    %2590 = vmatprep.subr.bf16.mxu0 0
    %2591 = vmatpush1.bf16.msra.mxu0 %v2252
    %2592 = vmatprep.subr.bf16.mxu0 0
    %2593 = vmatpush1.bf16.msra.mxu0 %v2253
    %2594 = vmatprep.subr.bf16.mxu0 0
    %2595 = vmatpush1.bf16.msra.mxu0 %v2254
    %2596 = vmatprep.subr.bf16.mxu0 0
    %2597 = vmatpush1.bf16.msra.mxu0 %v2255
    %2598 = vmatprep.subr.bf16.mxu0 0
    %2599 = vmatpush1.bf16.msra.mxu0 %v2256
    %2600 = vmatprep.subr.bf16.mxu0 0
    %2601 = vmatpush1.bf16.msra.mxu0 %v2257
    %2602 = vmatprep.mubr.bf16.mxu0 %v1410
    %2603 = vmatmul.mubr.bf16.gmra.mrb[0].mxu0 %v1409
    %v2604 = vpop.f32.mrb[0].mxu0
    %v2605 = vadd.f32 %v2565, %v2604
    %v2606 = vpop.f32.mrb[0].mxu0
    %v2607 = vpop.f32.mrb[0].mxu0
    %v2608 = vpop.f32.mrb[0].mxu0
    %2609 = vdwg.mxu0
    %2610 = vmatprep.subr.bf16.mxu0 0
    %2611 = vmatpush1.bf16.msra.mxu0 %v2258
    %2612 = vmatprep.subr.bf16.mxu0 0
    %2613 = vmatpush1.bf16.msra.mxu0 %v2259
    %2614 = vmatprep.subr.bf16.mxu0 0
    %2615 = vmatpush1.bf16.msra.mxu0 %v2260
    %2616 = vmatprep.subr.bf16.mxu0 0
    %2617 = vmatpush1.bf16.msra.mxu0 %v2261
    %2618 = vmatprep.subr.bf16.mxu0 0
    %2619 = vmatpush1.bf16.msra.mxu0 %v2262
    %2620 = vmatprep.subr.bf16.mxu0 0
    %2621 = vmatpush1.bf16.msra.mxu0 %v2263
    %2622 = vmatprep.subr.bf16.mxu0 0
    %2623 = vmatpush1.bf16.msra.mxu0 %v2264
    %2624 = vmatprep.subr.bf16.mxu0 0
    %2625 = vmatpush1.bf16.msra.mxu0 %v2265
    %2626 = vmatprep.subr.bf16.mxu0 0
    %2627 = vmatpush1.bf16.msra.mxu0 %v2266
    %2628 = vmatprep.subr.bf16.mxu0 0
    %2629 = vmatpush1.bf16.msra.mxu0 %v2267
    %2630 = vmatprep.subr.bf16.mxu0 0
    %2631 = vmatpush1.bf16.msra.mxu0 %v2268
    %2632 = vmatprep.subr.bf16.mxu0 0
    %2633 = vmatpush1.bf16.msra.mxu0 %v2269
    %2634 = vmatprep.subr.bf16.mxu0 0
    %2635 = vmatpush1.bf16.msra.mxu0 %v2270
    %2636 = vmatprep.subr.bf16.mxu0 0
    %2637 = vmatpush1.bf16.msra.mxu0 %v2271
    %2638 = vmatprep.subr.bf16.mxu0 0
    %2639 = vmatpush1.bf16.msra.mxu0 %v2272
    %2640 = vmatprep.subr.bf16.mxu0 0
    %2641 = vmatpush1.bf16.msra.mxu0 %v2273
    %2642 = vmatprep.mubr.bf16.mxu0 %v1412
    %2643 = vmatmul.mubr.bf16.gmra.mrb[0].mxu0 %v1411
    %v2644 = vpop.f32.mrb[0].mxu0
    %v2645 = vadd.f32 %v2605, %v2644
    %v2646 = vpop.f32.mrb[0].mxu0
    %v2647 = vpop.f32.mrb[0].mxu0
    %v2648 = vpop.f32.mrb[0].mxu0
    %2649 = vdwg.mxu0
    %2650 = vmatprep.subr.bf16.mxu0 0
    %2651 = vmatpush1.bf16.msra.mxu0 %v2274
    %2652 = vmatprep.subr.bf16.mxu0 0
    %2653 = vmatpush1.bf16.msra.mxu0 %v2275
    %2654 = vmatprep.subr.bf16.mxu0 0
    %2655 = vmatpush1.bf16.msra.mxu0 %v2276
    %2656 = vmatprep.subr.bf16.mxu0 0
    %2657 = vmatpush1.bf16.msra.mxu0 %v2277
    %2658 = vmatprep.subr.bf16.mxu0 0
    %2659 = vmatpush1.bf16.msra.mxu0 %v2278
    %2660 = vmatprep.subr.bf16.mxu0 0
    %2661 = vmatpush1.bf16.msra.mxu0 %v2279
    %2662 = vmatprep.subr.bf16.mxu0 0
    %2663 = vmatpush1.bf16.msra.mxu0 %v2280
    %2664 = vmatprep.subr.bf16.mxu0 0
    %2665 = vmatpush1.bf16.msra.mxu0 %v2281
    %2666 = vmatprep.subr.bf16.mxu0 0
    %2667 = vmatpush1.bf16.msra.mxu0 %v2282
    %2668 = vmatprep.subr.bf16.mxu0 0
    %2669 = vmatpush1.bf16.msra.mxu0 %v2283
    %2670 = vmatprep.subr.bf16.mxu0 0
    %2671 = vmatpush1.bf16.msra.mxu0 %v2284
    %2672 = vmatprep.subr.bf16.mxu0 0
    %2673 = vmatpush1.bf16.msra.mxu0 %v2285
    %2674 = vmatprep.subr.bf16.mxu0 0
    %2675 = vmatpush1.bf16.msra.mxu0 %v2286
    %2676 = vmatprep.subr.bf16.mxu0 0
    %2677 = vmatpush1.bf16.msra.mxu0 %v2287
    %2678 = vmatprep.subr.bf16.mxu0 0
    %2679 = vmatpush1.bf16.msra.mxu0 %v2288
    %2680 = vmatprep.subr.bf16.mxu0 0
    %2681 = vmatpush1.bf16.msra.mxu0 %v2289
    %2682 = vmatprep.mubr.bf16.mxu0 %v1414
    %2683 = vmatmul.mubr.bf16.gmra.mrb[0].mxu0 %v1413
    %v2684 = vpop.f32.mrb[0].mxu0
    %v2685 = vadd.f32 %v2645, %v2684
    %v2686 = vpop.f32.mrb[0].mxu0
    %v2687 = vpop.f32.mrb[0].mxu0
    %v2688 = vpop.f32.mrb[0].mxu0
    %2689 = vdwg.mxu0
    %2690 = vmatprep.subr.bf16.mxu0 0
    %2691 = vmatpush1.bf16.msra.mxu0 %v2290
    %2692 = vmatprep.subr.bf16.mxu0 0
    %2693 = vmatpush1.bf16.msra.mxu0 %v2291
    %2694 = vmatprep.subr.bf16.mxu0 0
    %2695 = vmatpush1.bf16.msra.mxu0 %v2292
    %2696 = vmatprep.subr.bf16.mxu0 0
    %2697 = vmatpush1.bf16.msra.mxu0 %v2293
    %2698 = vmatprep.subr.bf16.mxu0 0
    %2699 = vmatpush1.bf16.msra.mxu0 %v2294
    %2700 = vmatprep.subr.bf16.mxu0 0
    %2701 = vmatpush1.bf16.msra.mxu0 %v2295
    %2702 = vmatprep.subr.bf16.mxu0 0
    %2703 = vmatpush1.bf16.msra.mxu0 %v2296
    %2704 = vmatprep.subr.bf16.mxu0 0
    %2705 = vmatpush1.bf16.msra.mxu0 %v2297
    %2706 = vmatprep.subr.bf16.mxu0 0
    %2707 = vmatpush1.bf16.msra.mxu0 %v2298
    %2708 = vmatprep.subr.bf16.mxu0 0
    %2709 = vmatpush1.bf16.msra.mxu0 %v2299
    %2710 = vmatprep.subr.bf16.mxu0 0
    %2711 = vmatpush1.bf16.msra.mxu0 %v2300
    %2712 = vmatprep.subr.bf16.mxu0 0
    %2713 = vmatpush1.bf16.msra.mxu0 %v2301
    %2714 = vmatprep.subr.bf16.mxu0 0
    %2715 = vmatpush1.bf16.msra.mxu0 %v2302
    %2716 = vmatprep.subr.bf16.mxu0 0
    %2717 = vmatpush1.bf16.msra.mxu0 %v2303
    %2718 = vmatprep.subr.bf16.mxu0 0
    %2719 = vmatpush1.bf16.msra.mxu0 %v2304
    %2720 = vmatprep.subr.bf16.mxu0 0
    %2721 = vmatpush1.bf16.msra.mxu0 %v2305
    %2722 = vmatprep.mubr.bf16.mxu0 %v1416
    %2723 = vmatmul.mubr.bf16.gmra.mrb[0].mxu0 %v1415
    %v2724 = vpop.f32.mrb[0].mxu0
    %v2725 = vadd.f32 %v2685, %v2724
    %v2726 = vpop.f32.mrb[0].mxu0
    %v2727 = vpop.f32.mrb[0].mxu0
    %v2728 = vpop.f32.mrb[0].mxu0
    %2729 = vdwg.mxu0
    %2730 = vmatprep.subr.bf16.mxu0 0
    %2731 = vmatpush1.bf16.msra.mxu0 %v2306
    %2732 = vmatprep.subr.bf16.mxu0 0
    %2733 = vmatpush1.bf16.msra.mxu0 %v2307
    %2734 = vmatprep.subr.bf16.mxu0 0
    %2735 = vmatpush1.bf16.msra.mxu0 %v2308
    %2736 = vmatprep.subr.bf16.mxu0 0
    %2737 = vmatpush1.bf16.msra.mxu0 %v2309
    %2738 = vmatprep.subr.bf16.mxu0 0
    %2739 = vmatpush1.bf16.msra.mxu0 %v2310
    %2740 = vmatprep.subr.bf16.mxu0 0
    %2741 = vmatpush1.bf16.msra.mxu0 %v2311
    %2742 = vmatprep.subr.bf16.mxu0 0
    %2743 = vmatpush1.bf16.msra.mxu0 %v2312
    %2744 = vmatprep.subr.bf16.mxu0 0
    %2745 = vmatpush1.bf16.msra.mxu0 %v2313
    %2746 = vmatprep.subr.bf16.mxu0 0
    %2747 = vmatpush1.bf16.msra.mxu0 %v2314
    %2748 = vmatprep.subr.bf16.mxu0 0
    %2749 = vmatpush1.bf16.msra.mxu0 %v2315
    %2750 = vmatprep.subr.bf16.mxu0 0
    %2751 = vmatpush1.bf16.msra.mxu0 %v2316
    %2752 = vmatprep.subr.bf16.mxu0 0
    %2753 = vmatpush1.bf16.msra.mxu0 %v2317
    %2754 = vmatprep.subr.bf16.mxu0 0
    %2755 = vmatpush1.bf16.msra.mxu0 %v2318
    %2756 = vmatprep.subr.bf16.mxu0 0
    %2757 = vmatpush1.bf16.msra.mxu0 %v2319
    %2758 = vmatprep.subr.bf16.mxu0 0
    %2759 = vmatpush1.bf16.msra.mxu0 %v2320
    %2760 = vmatprep.subr.bf16.mxu0 0
    %2761 = vmatpush1.bf16.msra.mxu0 %v2321
    %2762 = vmatprep.mubr.bf16.mxu0 %v1418
    %2763 = vmatmul.mubr.bf16.gmra.mrb[0].mxu0 %v1417
    %v2764 = vpop.f32.mrb[0].mxu0
    %v2765 = vadd.f32 %v2725, %v2764
    %v2766 = vpop.f32.mrb[0].mxu0
    %v2767 = vpop.f32.mrb[0].mxu0
    %v2768 = vpop.f32.mrb[0].mxu0
    %2769 = vdwg.mxu0
    %v2770 = vmax.f32 %v2765, 0.0
    %2771 = vst [vmem:[#allocation11] sm:$0x3] %v2770
    // Predicated region
    $region50: #{tpu_custom_call.1} parent=1 // pred_check
      _
    $region51: #{tpu_custom_call.1} parent=1 // pred_check_branch
      %2773 = sbr.rel (0) target = $region53
    $region52: #{tpu_custom_call.1} parent=1 // pred_region
      %s2775 = ssub.s32 32, 32
      %2776 = vsyncadd [#allocation4], %s2775
      %s2778 = sshll.u32 [#allocation11], 4
      %s2779 = int_to_ptr.vmem [resolvable:$true] %s2778
      %2781 = dma.vmem_to_hbm [thread:$0]  %s2779, 32, %s7, [#allocation4]
    $region53: #{tpu_custom_call.1} parent=1 // pred_fallthru
      _
    // Predicated region
    $region54: #{tpu_custom_call.1} parent=1 // pred_check
      _
    $region55: #{tpu_custom_call.1} parent=1 // pred_check_branch
      %2783 = sbr.rel (0) target = $region57
    $region56: #{tpu_custom_call.1} parent=1 // pred_region
      %2784 = dma.done [#allocation4], 32
    $region57: #{tpu_custom_call.1} parent=1 // pred_fallthru
      _
    %2785 = vsyncpa [#allocation3], 1
    %2786 = vsyncpa [#allocation6], 1
    %2787 = vsyncpa [#allocation9], 1
    %2788 = vsyncpa [#allocation4], 1

</llo_original>
